<compile_context>
chip_gen: v7x
topology: tpu7x:2x2x1
jax: 0.10.0
libtpu: 0.0.40
codegen_flags: <defaults>
</compile_context>

<pallas_src>
import jax
import jax.numpy as jnp
from jax.experimental import pallas as pl
from jax.experimental.pallas import tpu as pltpu

# ----------------------------- model dimensions -----------------------------
EMBED = 16          # LSTM hidden size ("embedding" in the PyTorch module)
FAULT_TYPE = 6      # number of fault classes per head
FEAT = 8            # LSTM input feature size (Encoder input dim, chosen small)
HEAD_PAD = 8        # head output rows padded to a full sublane group


# ------------------------------- Pallas kernel ------------------------------
def _lstm_head_kernel(loc_ref, x_ref, wih_ref, whh_ref, bg_ref, wo_ref, bo_ref,
                      out_ref, xw_ref):
    """Fused LSTM encoder (last hidden state) + selected classification head.

    Layouts (batch on lanes, gates on sublanes):
      loc_ref : (1,)        i32  SMEM scalar-prefetch (head selector, only used in index_maps)
      x_ref   : (F, T*TB)   f32  batch tile, feature-major; lanes [t*TB:(t+1)*TB] = timestep t
      wih_ref : (4H, F)     f32  input->gate weights, gate rows ordered [i, f, o, g]
      whh_ref : (4H, H)     f32  hidden->gate weights, same row order
      bg_ref  : (4H, 1)     f32  combined gate bias (b_ih + b_hh), same row order
      wo_ref  : (CP, H)     f32  selected head weights (rows >= C are zero padding)
      bo_ref  : (CP, 1)     f32  selected head bias
      out_ref : (CP, TB)    f32  logits of the selected head (lane-dense store)
      xw_ref  : (4H, T*TB)  f32  VMEM scratch: precomputed x @ W_ih + b (lane-major in time)
    """
    del loc_ref  # only consumed by the BlockSpec index_maps
    H = whh_ref.shape[1]
    TB = out_ref.shape[1]
    T = xw_ref.shape[1] // TB

    # ---- hoisted input projection: one MXU matmul + one contiguous lane-dense store ----
    xw_ref[...] = (jnp.dot(wih_ref[...], x_ref[...], preferred_element_type=jnp.float32)
                   + bg_ref[...])                                  # (4H, T*TB)

    whh = whh_ref[...]        # hoisted loop-invariant weight load

    def step(t, carry):
        h, c = carry                                               # vreg-resident state
        off = pl.multiple_of(t * TB, 128)
        # gates = x_t @ W_ih + b (precomputed)  +  h @ W_hh
        gates = (xw_ref[:, pl.ds(off, TB)]
                 + jnp.dot(whh, h, preferred_element_type=jnp.float32))   # (4H, TB)
        # gate rows pre-permuted to [i, f, o, g]:
        #   sigmoid(x) == 0.5*tanh(0.5*x) + 0.5  -> a single EUP pass over the 3H block
        sig = 0.5 * jnp.tanh(0.5 * gates[:3 * H, :]) + 0.5         # (3H, TB)
        i_g = sig[0 * H:1 * H, :]
        f_g = sig[1 * H:2 * H, :]
        o_g = sig[2 * H:3 * H, :]
        g_g = jnp.tanh(gates[3 * H:, :])
        c_new = f_g * c + i_g * g_g
        h_new = o_g * jnp.tanh(c_new)
        return (h_new, c_new)

    h0 = jnp.zeros((H, TB), jnp.float32)
    c0 = jnp.zeros((H, TB), jnp.float32)
    unroll = True if T <= 8 else 4
    h_last, _ = jax.lax.fori_loop(0, T, step, (h0, c0), unroll=unroll)

    # out = W_head @ h_last + b_head   (selected Linear(16 -> 6), rows padded to 8)
    out_ref[...] = (jnp.dot(wo_ref[...], h_last, preferred_element_type=jnp.float32)
                    + bo_ref[...])


# ------------------------------ Python wrapper -------------------------------
def _num_tensorcores():
    """Best-effort TensorCore-per-chip count (v7x has 2); defaults to 1."""
    try:
        info = pltpu.get_tpu_info()
        for attr in ("num_cores", "tensorcores_per_chip", "num_tensorcores"):
            v = getattr(info, attr, None)
            if v:
                return int(v)
    except Exception:
        pass
    try:
        v = getattr(jax.devices()[0], "num_cores", None)
        if v:
            return int(v)
    except Exception:
        pass
    return 1


def _vmem_budget_bytes():
    """Best-effort VMEM capacity with headroom (v7x: 64 MiB, v5e/v6e: 128 MiB)."""
    try:
        cap = int(pltpu.get_tpu_info().vmem_capacity_bytes)
    except Exception:
        cap = 64 << 20
    return max(16 << 20, int(cap * 0.6))


def _pick_batch_tile(B, T, F, H, num_cores, budget):
    """Largest lane-dense batch tile whose buffers fit the VMEM budget; on multi-TC
    chips guarantee >= 2 grid tiles when B spans more than one 128-lane tile."""
    def fits(tb):
        xw = 4 * H * T * tb * 4          # projection scratch
        xin = 2 * F * T * tb * 4         # double-buffered input tile
        return xw + xin <= budget
    tb = 128
    for cand in (512, 256, 128):
        if B >= cand and fits(cand):
            tb = cand
            break
    if num_cores > 1 and B > 128:
        while tb > 128 and (B + tb - 1) // tb < num_cores:
            tb //= 2
    return tb
    # TODO(synk): for very long T even tb=128 can exceed the budget; that case needs a
    #             time-chunked projection (compute Tc steps of xw at a time, double-buffered).


@jax.jit
def _forward_pallas(loc_idx, x_btf, wih, whh, bg, wo_stack, bo_stack):
    """loc_idx: (1,) int32 in {0,1,2}; x_btf: (B, T, F) f32. Returns (B, C) logits."""
    B, T, F = x_btf.shape
    H = whh.shape[1]
    CP = wo_stack.shape[1]

    budget = _vmem_budget_bytes()
    tb = _pick_batch_tile(B, T, F, H, _num_tensorcores(), budget)
    bp = ((B + tb - 1) // tb) * tb
    nb = bp // tb

    # Host-side layout plumbing: pad batch to a lane multiple and pre-arrange each batch tile
    # as a (F, T*TB) slab so the kernel's hoisted projection is a single row-major matmul.
    # (If x comes from an upstream op, produce it in this layout directly to skip this pass.)
    x_p = jnp.pad(x_btf, ((0, bp - B), (0, 0), (0, 0)))          # (Bp, T, F)
    x_p = (x_p.reshape(nb, tb, T, F)
               .transpose(0, 3, 2, 1)                            # (nb, F, T, TB)
               .reshape(nb, F, T * tb))                          # (nb, F, T*TB)

    # Explicit VMEM sizing (double-buffered inputs/outputs + scratch + weights) + headroom.
    need = (2 * F * T * tb * 4                      # x tile (double-buffered)
            + 4 * H * T * tb * 4                    # xw scratch
            + 2 * CP * tb * 4                       # out tile (double-buffered)
            + 2 * 4 * H * (F + H + 1) * 4           # gate weights (double-buffered)
            + 2 * CP * (H + 1) * 4)                 # head weights (double-buffered)
    vmem_limit = int(min(budget, max(need + (4 << 20), 16 << 20)))

    grid_spec = pltpu.PrefetchScalarGridSpec(
        num_scalar_prefetch=1,
        grid=(nb,),
        in_specs=[
            pl.BlockSpec((None, F, T * tb), lambda b, loc: (b, 0, 0)),       # x batch tile
            pl.BlockSpec((4 * H, F), lambda b, loc: (0, 0)),                 # W_ih
            pl.BlockSpec((4 * H, H), lambda b, loc: (0, 0)),                 # W_hh
            pl.BlockSpec((4 * H, 1), lambda b, loc: (0, 0)),                 # gate bias
            pl.BlockSpec((None, CP, H), lambda b, loc: (loc[0], 0, 0)),      # selected head W
            pl.BlockSpec((None, CP, 1), lambda b, loc: (loc[0], 0, 0)),      # selected head b
        ],
        out_specs=pl.BlockSpec((CP, tb), lambda b, loc: (0, b)),
        scratch_shapes=[
            pltpu.VMEM((4 * H, T * tb), jnp.float32),   # precomputed input projections
        ],
    )

    out_p = pl.pallas_call(
        _lstm_head_kernel,
        out_shape=jax.ShapeDtypeStruct((CP, bp), jnp.float32),
        grid_spec=grid_spec,
        compiler_params=pltpu.CompilerParams(
            dimension_semantics=("parallel",),
            vmem_limit_bytes=vmem_limit,
        ),
    )(loc_idx, x_p, wih, whh, bg, wo_stack, bo_stack)

    # (CP, Bp) -> (B, C): drop padded rows/lanes, back to batch-first.
    return out_p[:FAULT_TYPE, :B].T


class GeneralizationModel2:
    """JAX/Pallas port of Generalization_model2 (inference path)."""

    def __init__(self, key):
        H, F, C, CP = EMBED, FEAT, FAULT_TYPE, HEAD_PAD
        ks = jax.random.split(key, 10)
        s = 1.0 / jnp.sqrt(H)

        # --- PyTorch-layout parameters (gate order i, f, g, o) kept for the reference ---
        self.w_ih = jax.random.uniform(ks[0], (4 * H, F), jnp.float32, -s, s)
        self.w_hh = jax.random.uniform(ks[1], (4 * H, H), jnp.float32, -s, s)
        self.b_ih = jax.random.uniform(ks[2], (4 * H,), jnp.float32, -s, s)
        self.b_hh = jax.random.uniform(ks[3], (4 * H,), jnp.float32, -s, s)
        self.head_w = []   # (C, H) each, PyTorch Linear layout
        self.head_b = []   # (C,)
        for hi in range(3):
            self.head_w.append(jax.random.uniform(ks[4 + 2 * hi], (C, H), jnp.float32, -s, s))
            self.head_b.append(jax.random.uniform(ks[5 + 2 * hi], (C,), jnp.float32, -s, s))

        # --- kernel-prepped parameters (one-time, host side) ---
        # permute gate rows (i, f, g, o) -> (i, f, o, g) so the 3 sigmoid gates are contiguous
        perm = jnp.concatenate([jnp.arange(0, H), jnp.arange(H, 2 * H),
                                jnp.arange(3 * H, 4 * H), jnp.arange(2 * H, 3 * H)])
        self.k_wih = self.w_ih[perm]                                   # (4H, F)
        self.k_whh = self.w_hh[perm]                                   # (4H, H)
        self.k_bg = (self.b_ih + self.b_hh)[perm].reshape(4 * H, 1)    # (4H, 1)
        # heads stacked and row-padded to a full sublane group; selected at runtime via `loc`
        self.k_wo = jnp.stack([jnp.pad(w, ((0, CP - C), (0, 0))) for w in self.head_w])  # (3,CP,H)
        self.k_bo = jnp.stack([jnp.pad(b, (0, CP - C)).reshape(CP, 1) for b in self.head_b])

    def forward(self, x_btf, loc):
        """x_btf: (B, T, F) float32, batch_first (PyTorch convention). loc in {1,2,3}."""
        assert loc in (1, 2, 3)
        loc_idx = jnp.array([loc - 1], jnp.int32)     # runtime scalar: no per-loc recompilation
        logits = _forward_pallas(loc_idx, x_btf, self.k_wih, self.k_whh, self.k_bg,
                                 self.k_wo, self.k_bo)
        outs = [None, None, None]
        outs[loc - 1] = logits
        return tuple(outs)


# --------------------------- pure-JAX reference check ------------------------
def _reference(model, x_btf, loc):
    H = EMBED
    B, T, F = x_btf.shape
    h = jnp.zeros((B, H), jnp.float32)
    c = jnp.zeros((B, H), jnp.float32)
    wih_t, whh_t = model.w_ih.T, model.w_hh.T
    b = (model.b_ih + model.b_hh)[None, :]
    for t in range(T):
        gates = x_btf[:, t, :] @ wih_t + h @ whh_t + b
        i = jax.nn.sigmoid(gates[:, 0 * H:1 * H])
        f = jax.nn.sigmoid(gates[:, 1 * H:2 * H])
        g = jnp.tanh(gates[:, 2 * H:3 * H])
        o = jax.nn.sigmoid(gates[:, 3 * H:4 * H])
        c = f * c + i * g
        h = o * jnp.tanh(c)
    w, bh = model.head_w[loc - 1], model.head_b[loc - 1]
    return h @ w.T + bh[None, :]


if __name__ == "__main__":
    key = jax.random.PRNGKey(0)
    k_param, k_x = jax.random.split(key)

    B, T = 2, 8
    x = jax.random.normal(k_x, (B, T, FEAT), jnp.float32)

    model = GeneralizationModel2(k_param)

    loc = 2
    f1, f2, f3 = model.forward(x, loc)
    out = jax.block_until_ready((f1, f2, f3)[loc - 1])

    assert out.shape == (B, FAULT_TYPE)
    assert f1 is None and f3 is None

    ref = _reference(model, x, loc)
    assert jnp.allclose(out, ref, atol=1e-4, rtol=1e-4), (out, ref)

    # exercise another head through the SAME compiled kernel (loc is a runtime scalar)
    g1, _, _ = model.forward(x, 1)
    assert jnp.allclose(jax.block_until_ready(g1), _reference(model, x, 1), atol=1e-4, rtol=1e-4)

    print("KERNEL_OK")
</pallas_src>

<mosaic_0001>
module attributes {stable_mosaic.version = 11 : i64} {
  func.func @_lstm_head_kernel(%arg0: i32, %arg1: memref<1xi32, #tpu.memory_space<smem>>, %arg2: memref<1x8x1024xf32, #tpu.memory_space<vmem>>, %arg3: memref<64x8xf32, #tpu.memory_space<vmem>>, %arg4: memref<64x16xf32, #tpu.memory_space<vmem>>, %arg5: memref<64x1xf32, #tpu.memory_space<vmem>>, %arg6: memref<1x8x16xf32, #tpu.memory_space<vmem>>, %arg7: memref<1x8x1xf32, #tpu.memory_space<vmem>>, %arg8: memref<8x128xf32, #tpu.memory_space<vmem>>, %arg9: memref<64x1024xf32, #tpu.memory_space<vmem>>) attributes {dimension_semantics = [#tpu.dimension_semantics<parallel>], iteration_bounds = array<i64: 1>, scalar_prefetch = 1 : i64, scratch_operands = 1 : i64, tpu.core_type = #tpu.core_type<tc>, window_params = [{transform_indices = @transform_0, window_bounds = array<i64: 1, 8, 1024>}, {pipeline_mode = #tpu.pipeline_mode<synchronous>, transform_indices = @transform_1, window_bounds = array<i64: 64, 8>}, {pipeline_mode = #tpu.pipeline_mode<synchronous>, transform_indices = @transform_2, window_bounds = array<i64: 64, 16>}, {pipeline_mode = #tpu.pipeline_mode<synchronous>, transform_indices = @transform_3, window_bounds = array<i64: 64, 1>}, {transform_indices = @transform_4, window_bounds = array<i64: 1, 8, 16>}, {transform_indices = @transform_5, window_bounds = array<i64: 1, 8, 1>}, {transform_indices = @transform_6, window_bounds = array<i64: 8, 128>}]} {
    %c0 = arith.constant 0 : index
    %c0_0 = arith.constant 0 : index
    %0 = vector.load %arg3[%c0, %c0_0] : memref<64x8xf32, #tpu.memory_space<vmem>>, vector<64x8xf32>
    %c0_1 = arith.constant 0 : index
    %c0_2 = arith.constant 0 : index
    %c0_3 = arith.constant 0 : index
    %1 = vector.load %arg2[%c0_1, %c0_2, %c0_3] : memref<1x8x1024xf32, #tpu.memory_space<vmem>>, vector<1x8x1024xf32>
    %2 = vector.shape_cast %1 : vector<1x8x1024xf32> to vector<8x1024xf32>
    %cst = arith.constant dense<0.000000e+00> : vector<64x1024xf32>
    %3 = tpu.matmul %0, %2, %cst {dimension_numbers = #tpu.dot_dimension_numbers<[1], [0], [0], [1], [0, 0, 1, 1], [], []>} : vector<64x8xf32>, vector<8x1024xf32>, vector<64x1024xf32> -> vector<64x1024xf32>
    %c0_4 = arith.constant 0 : index
    %c0_5 = arith.constant 0 : index
    %4 = vector.load %arg5[%c0_4, %c0_5] : memref<64x1xf32, #tpu.memory_space<vmem>>, vector<64x1xf32>
    %5 = vector.broadcast %4 : vector<64x1xf32> to vector<64x1024xf32>
    %6 = arith.addf %3, %5 : vector<64x1024xf32>
    %c0_6 = arith.constant 0 : index
    %c0_7 = arith.constant 0 : index
    %7 = vector.load %arg9[%c0_6, %c0_7] : memref<64x1024xf32, #tpu.memory_space<vmem>>, vector<64x1024xf32>
    tpu.vector_store %arg9[%c0_6, %c0_7], %6 {strides = array<i32>} : memref<64x1024xf32, #tpu.memory_space<vmem>>, vector<64x1024xf32>,
    %c0_8 = arith.constant 0 : index
    %c0_9 = arith.constant 0 : index
    %8 = vector.load %arg4[%c0_8, %c0_9] : memref<64x16xf32, #tpu.memory_space<vmem>>, vector<64x16xf32>
    %cst_10 = arith.constant 0.000000e+00 : f32
    %9 = vector.broadcast %cst_10 : f32 to vector<16x128xf32>
    %cst_11 = arith.constant 0.000000e+00 : f32
    %10 = vector.broadcast %cst_11 : f32 to vector<16x128xf32>
    %c0_i32 = arith.constant 0 : i32
    %c128_i32 = arith.constant 128 : i32
    %11 = arith.muli %c0_i32, %c128_i32 : i32
    %12 = tpu.assume_multiple %11, 128 : i32
    %c0_12 = arith.constant 0 : index
    %13 = arith.index_cast %12 : i32 to index
    %14 = vector.load %arg9[%c0_12, %13] : memref<64x1024xf32, #tpu.memory_space<vmem>>, vector<64x128xf32>
    %cst_13 = arith.constant dense<0.000000e+00> : vector<64x128xf32>
    %15 = tpu.matmul %8, %9, %cst_13 {dimension_numbers = #tpu.dot_dimension_numbers<[1], [0], [0], [1], [0, 0, 1, 1], [], []>} : vector<64x16xf32>, vector<16x128xf32>, vector<64x128xf32> -> vector<64x128xf32>
    %16 = arith.addf %14, %15 : vector<64x128xf32>
    %17 = vector.extract_strided_slice %16 {offsets = [0, 0], sizes = [48, 128], strides = [1, 1]} : vector<64x128xf32> to vector<48x128xf32>
    %cst_14 = arith.constant 5.000000e-01 : f32
    %18 = vector.broadcast %cst_14 : f32 to vector<48x128xf32>
    %19 = arith.mulf %18, %17 : vector<48x128xf32>
    %20 = math.tanh %19 : vector<48x128xf32>
    %cst_15 = arith.constant 5.000000e-01 : f32
    %21 = vector.broadcast %cst_15 : f32 to vector<48x128xf32>
    %22 = arith.mulf %21, %20 : vector<48x128xf32>
    %cst_16 = arith.constant 5.000000e-01 : f32
    %23 = vector.broadcast %cst_16 : f32 to vector<48x128xf32>
    %24 = arith.addf %22, %23 : vector<48x128xf32>
    %25 = vector.extract_strided_slice %24 {offsets = [0, 0], sizes = [16, 128], strides = [1, 1]} : vector<48x128xf32> to vector<16x128xf32>
    %26 = vector.extract_strided_slice %24 {offsets = [16, 0], sizes = [16, 128], strides = [1, 1]} : vector<48x128xf32> to vector<16x128xf32>
    %27 = vector.extract_strided_slice %24 {offsets = [32, 0], sizes = [16, 128], strides = [1, 1]} : vector<48x128xf32> to vector<16x128xf32>
    %28 = vector.extract_strided_slice %16 {offsets = [48, 0], sizes = [16, 128], strides = [1, 1]} : vector<64x128xf32> to vector<16x128xf32>
    %29 = math.tanh %28 : vector<16x128xf32>
    %30 = arith.mulf %26, %10 : vector<16x128xf32>
    %31 = arith.mulf %25, %29 : vector<16x128xf32>
    %32 = arith.addf %30, %31 : vector<16x128xf32>
    %33 = math.tanh %32 : vector<16x128xf32>
    %34 = arith.mulf %27, %33 : vector<16x128xf32>
    %c1_i32 = arith.constant 1 : i32
    %c128_i32_17 = arith.constant 128 : i32
    %35 = arith.muli %c1_i32, %c128_i32_17 : i32
    %36 = tpu.assume_multiple %35, 128 : i32
    %c0_18 = arith.constant 0 : index
    %37 = arith.index_cast %36 : i32 to index
    %38 = vector.load %arg9[%c0_18, %37] : memref<64x1024xf32, #tpu.memory_space<vmem>>, vector<64x128xf32>
    %cst_19 = arith.constant dense<0.000000e+00> : vector<64x128xf32>
    %39 = tpu.matmul %8, %34, %cst_19 {dimension_numbers = #tpu.dot_dimension_numbers<[1], [0], [0], [1], [0, 0, 1, 1], [], []>} : vector<64x16xf32>, vector<16x128xf32>, vector<64x128xf32> -> vector<64x128xf32>
    %40 = arith.addf %38, %39 : vector<64x128xf32>
    %41 = vector.extract_strided_slice %40 {offsets = [0, 0], sizes = [48, 128], strides = [1, 1]} : vector<64x128xf32> to vector<48x128xf32>
    %cst_20 = arith.constant 5.000000e-01 : f32
    %42 = vector.broadcast %cst_20 : f32 to vector<48x128xf32>
    %43 = arith.mulf %42, %41 : vector<48x128xf32>
    %44 = math.tanh %43 : vector<48x128xf32>
    %cst_21 = arith.constant 5.000000e-01 : f32
    %45 = vector.broadcast %cst_21 : f32 to vector<48x128xf32>
    %46 = arith.mulf %45, %44 : vector<48x128xf32>
    %cst_22 = arith.constant 5.000000e-01 : f32
    %47 = vector.broadcast %cst_22 : f32 to vector<48x128xf32>
    %48 = arith.addf %46, %47 : vector<48x128xf32>
    %49 = vector.extract_strided_slice %48 {offsets = [0, 0], sizes = [16, 128], strides = [1, 1]} : vector<48x128xf32> to vector<16x128xf32>
    %50 = vector.extract_strided_slice %48 {offsets = [16, 0], sizes = [16, 128], strides = [1, 1]} : vector<48x128xf32> to vector<16x128xf32>
    %51 = vector.extract_strided_slice %48 {offsets = [32, 0], sizes = [16, 128], strides = [1, 1]} : vector<48x128xf32> to vector<16x128xf32>
    %52 = vector.extract_strided_slice %40 {offsets = [48, 0], sizes = [16, 128], strides = [1, 1]} : vector<64x128xf32> to vector<16x128xf32>
    %53 = math.tanh %52 : vector<16x128xf32>
    %54 = arith.mulf %50, %32 : vector<16x128xf32>
    %55 = arith.mulf %49, %53 : vector<16x128xf32>
    %56 = arith.addf %54, %55 : vector<16x128xf32>
    %57 = math.tanh %56 : vector<16x128xf32>
    %58 = arith.mulf %51, %57 : vector<16x128xf32>
    %c2_i32 = arith.constant 2 : i32
    %c128_i32_23 = arith.constant 128 : i32
    %59 = arith.muli %c2_i32, %c128_i32_23 : i32
    %60 = tpu.assume_multiple %59, 128 : i32
    %c0_24 = arith.constant 0 : index
    %61 = arith.index_cast %60 : i32 to index
    %62 = vector.load %arg9[%c0_24, %61] : memref<64x1024xf32, #tpu.memory_space<vmem>>, vector<64x128xf32>
    %cst_25 = arith.constant dense<0.000000e+00> : vector<64x128xf32>
    %63 = tpu.matmul %8, %58, %cst_25 {dimension_numbers = #tpu.dot_dimension_numbers<[1], [0], [0], [1], [0, 0, 1, 1], [], []>} : vector<64x16xf32>, vector<16x128xf32>, vector<64x128xf32> -> vector<64x128xf32>
    %64 = arith.addf %62, %63 : vector<64x128xf32>
    %65 = vector.extract_strided_slice %64 {offsets = [0, 0], sizes = [48, 128], strides = [1, 1]} : vector<64x128xf32> to vector<48x128xf32>
    %cst_26 = arith.constant 5.000000e-01 : f32
    %66 = vector.broadcast %cst_26 : f32 to vector<48x128xf32>
    %67 = arith.mulf %66, %65 : vector<48x128xf32>
    %68 = math.tanh %67 : vector<48x128xf32>
    %cst_27 = arith.constant 5.000000e-01 : f32
    %69 = vector.broadcast %cst_27 : f32 to vector<48x128xf32>
    %70 = arith.mulf %69, %68 : vector<48x128xf32>
    %cst_28 = arith.constant 5.000000e-01 : f32
    %71 = vector.broadcast %cst_28 : f32 to vector<48x128xf32>
    %72 = arith.addf %70, %71 : vector<48x128xf32>
    %73 = vector.extract_strided_slice %72 {offsets = [0, 0], sizes = [16, 128], strides = [1, 1]} : vector<48x128xf32> to vector<16x128xf32>
    %74 = vector.extract_strided_slice %72 {offsets = [16, 0], sizes = [16, 128], strides = [1, 1]} : vector<48x128xf32> to vector<16x128xf32>
    %75 = vector.extract_strided_slice %72 {offsets = [32, 0], sizes = [16, 128], strides = [1, 1]} : vector<48x128xf32> to vector<16x128xf32>
    %76 = vector.extract_strided_slice %64 {offsets = [48, 0], sizes = [16, 128], strides = [1, 1]} : vector<64x128xf32> to vector<16x128xf32>
    %77 = math.tanh %76 : vector<16x128xf32>
    %78 = arith.mulf %74, %56 : vector<16x128xf32>
    %79 = arith.mulf %73, %77 : vector<16x128xf32>
    %80 = arith.addf %78, %79 : vector<16x128xf32>
    %81 = math.tanh %80 : vector<16x128xf32>
    %82 = arith.mulf %75, %81 : vector<16x128xf32>
    %c3_i32 = arith.constant 3 : i32
    %c128_i32_29 = arith.constant 128 : i32
    %83 = arith.muli %c3_i32, %c128_i32_29 : i32
    %84 = tpu.assume_multiple %83, 128 : i32
    %c0_30 = arith.constant 0 : index
    %85 = arith.index_cast %84 : i32 to index
    %86 = vector.load %arg9[%c0_30, %85] : memref<64x1024xf32, #tpu.memory_space<vmem>>, vector<64x128xf32>
    %cst_31 = arith.constant dense<0.000000e+00> : vector<64x128xf32>
    %87 = tpu.matmul %8, %82, %cst_31 {dimension_numbers = #tpu.dot_dimension_numbers<[1], [0], [0], [1], [0, 0, 1, 1], [], []>} : vector<64x16xf32>, vector<16x128xf32>, vector<64x128xf32> -> vector<64x128xf32>
    %88 = arith.addf %86, %87 : vector<64x128xf32>
    %89 = vector.extract_strided_slice %88 {offsets = [0, 0], sizes = [48, 128], strides = [1, 1]} : vector<64x128xf32> to vector<48x128xf32>
    %cst_32 = arith.constant 5.000000e-01 : f32
    %90 = vector.broadcast %cst_32 : f32 to vector<48x128xf32>
    %91 = arith.mulf %90, %89 : vector<48x128xf32>
    %92 = math.tanh %91 : vector<48x128xf32>
    %cst_33 = arith.constant 5.000000e-01 : f32
    %93 = vector.broadcast %cst_33 : f32 to vector<48x128xf32>
    %94 = arith.mulf %93, %92 : vector<48x128xf32>
    %cst_34 = arith.constant 5.000000e-01 : f32
    %95 = vector.broadcast %cst_34 : f32 to vector<48x128xf32>
    %96 = arith.addf %94, %95 : vector<48x128xf32>
    %97 = vector.extract_strided_slice %96 {offsets = [0, 0], sizes = [16, 128], strides = [1, 1]} : vector<48x128xf32> to vector<16x128xf32>
    %98 = vector.extract_strided_slice %96 {offsets = [16, 0], sizes = [16, 128], strides = [1, 1]} : vector<48x128xf32> to vector<16x128xf32>
    %99 = vector.extract_strided_slice %96 {offsets = [32, 0], sizes = [16, 128], strides = [1, 1]} : vector<48x128xf32> to vector<16x128xf32>
    %100 = vector.extract_strided_slice %88 {offsets = [48, 0], sizes = [16, 128], strides = [1, 1]} : vector<64x128xf32> to vector<16x128xf32>
    %101 = math.tanh %100 : vector<16x128xf32>
    %102 = arith.mulf %98, %80 : vector<16x128xf32>
    %103 = arith.mulf %97, %101 : vector<16x128xf32>
    %104 = arith.addf %102, %103 : vector<16x128xf32>
    %105 = math.tanh %104 : vector<16x128xf32>
    %106 = arith.mulf %99, %105 : vector<16x128xf32>
    %c4_i32 = arith.constant 4 : i32
    %c128_i32_35 = arith.constant 128 : i32
    %107 = arith.muli %c4_i32, %c128_i32_35 : i32
    %108 = tpu.assume_multiple %107, 128 : i32
    %c0_36 = arith.constant 0 : index
    %109 = arith.index_cast %108 : i32 to index
    %110 = vector.load %arg9[%c0_36, %109] : memref<64x1024xf32, #tpu.memory_space<vmem>>, vector<64x128xf32>
    %cst_37 = arith.constant dense<0.000000e+00> : vector<64x128xf32>
    %111 = tpu.matmul %8, %106, %cst_37 {dimension_numbers = #tpu.dot_dimension_numbers<[1], [0], [0], [1], [0, 0, 1, 1], [], []>} : vector<64x16xf32>, vector<16x128xf32>, vector<64x128xf32> -> vector<64x128xf32>
    %112 = arith.addf %110, %111 : vector<64x128xf32>
    %113 = vector.extract_strided_slice %112 {offsets = [0, 0], sizes = [48, 128], strides = [1, 1]} : vector<64x128xf32> to vector<48x128xf32>
    %cst_38 = arith.constant 5.000000e-01 : f32
    %114 = vector.broadcast %cst_38 : f32 to vector<48x128xf32>
    %115 = arith.mulf %114, %113 : vector<48x128xf32>
    %116 = math.tanh %115 : vector<48x128xf32>
    %cst_39 = arith.constant 5.000000e-01 : f32
    %117 = vector.broadcast %cst_39 : f32 to vector<48x128xf32>
    %118 = arith.mulf %117, %116 : vector<48x128xf32>
    %cst_40 = arith.constant 5.000000e-01 : f32
    %119 = vector.broadcast %cst_40 : f32 to vector<48x128xf32>
    %120 = arith.addf %118, %119 : vector<48x128xf32>
    %121 = vector.extract_strided_slice %120 {offsets = [0, 0], sizes = [16, 128], strides = [1, 1]} : vector<48x128xf32> to vector<16x128xf32>
    %122 = vector.extract_strided_slice %120 {offsets = [16, 0], sizes = [16, 128], strides = [1, 1]} : vector<48x128xf32> to vector<16x128xf32>
    %123 = vector.extract_strided_slice %120 {offsets = [32, 0], sizes = [16, 128], strides = [1, 1]} : vector<48x128xf32> to vector<16x128xf32>
    %124 = vector.extract_strided_slice %112 {offsets = [48, 0], sizes = [16, 128], strides = [1, 1]} : vector<64x128xf32> to vector<16x128xf32>
    %125 = math.tanh %124 : vector<16x128xf32>
    %126 = arith.mulf %122, %104 : vector<16x128xf32>
    %127 = arith.mulf %121, %125 : vector<16x128xf32>
    %128 = arith.addf %126, %127 : vector<16x128xf32>
    %129 = math.tanh %128 : vector<16x128xf32>
    %130 = arith.mulf %123, %129 : vector<16x128xf32>
    %c5_i32 = arith.constant 5 : i32
    %c128_i32_41 = arith.constant 128 : i32
    %131 = arith.muli %c5_i32, %c128_i32_41 : i32
    %132 = tpu.assume_multiple %131, 128 : i32
    %c0_42 = arith.constant 0 : index
    %133 = arith.index_cast %132 : i32 to index
    %134 = vector.load %arg9[%c0_42, %133] : memref<64x1024xf32, #tpu.memory_space<vmem>>, vector<64x128xf32>
    %cst_43 = arith.constant dense<0.000000e+00> : vector<64x128xf32>
    %135 = tpu.matmul %8, %130, %cst_43 {dimension_numbers = #tpu.dot_dimension_numbers<[1], [0], [0], [1], [0, 0, 1, 1], [], []>} : vector<64x16xf32>, vector<16x128xf32>, vector<64x128xf32> -> vector<64x128xf32>
    %136 = arith.addf %134, %135 : vector<64x128xf32>
    %137 = vector.extract_strided_slice %136 {offsets = [0, 0], sizes = [48, 128], strides = [1, 1]} : vector<64x128xf32> to vector<48x128xf32>
    %cst_44 = arith.constant 5.000000e-01 : f32
    %138 = vector.broadcast %cst_44 : f32 to vector<48x128xf32>
    %139 = arith.mulf %138, %137 : vector<48x128xf32>
    %140 = math.tanh %139 : vector<48x128xf32>
    %cst_45 = arith.constant 5.000000e-01 : f32
    %141 = vector.broadcast %cst_45 : f32 to vector<48x128xf32>
    %142 = arith.mulf %141, %140 : vector<48x128xf32>
    %cst_46 = arith.constant 5.000000e-01 : f32
    %143 = vector.broadcast %cst_46 : f32 to vector<48x128xf32>
    %144 = arith.addf %142, %143 : vector<48x128xf32>
    %145 = vector.extract_strided_slice %144 {offsets = [0, 0], sizes = [16, 128], strides = [1, 1]} : vector<48x128xf32> to vector<16x128xf32>
    %146 = vector.extract_strided_slice %144 {offsets = [16, 0], sizes = [16, 128], strides = [1, 1]} : vector<48x128xf32> to vector<16x128xf32>
    %147 = vector.extract_strided_slice %144 {offsets = [32, 0], sizes = [16, 128], strides = [1, 1]} : vector<48x128xf32> to vector<16x128xf32>
    %148 = vector.extract_strided_slice %136 {offsets = [48, 0], sizes = [16, 128], strides = [1, 1]} : vector<64x128xf32> to vector<16x128xf32>
    %149 = math.tanh %148 : vector<16x128xf32>
    %150 = arith.mulf %146, %128 : vector<16x128xf32>
    %151 = arith.mulf %145, %149 : vector<16x128xf32>
    %152 = arith.addf %150, %151 : vector<16x128xf32>
    %153 = math.tanh %152 : vector<16x128xf32>
    %154 = arith.mulf %147, %153 : vector<16x128xf32>
    %c6_i32 = arith.constant 6 : i32
    %c128_i32_47 = arith.constant 128 : i32
    %155 = arith.muli %c6_i32, %c128_i32_47 : i32
    %156 = tpu.assume_multiple %155, 128 : i32
    %c0_48 = arith.constant 0 : index
    %157 = arith.index_cast %156 : i32 to index
    %158 = vector.load %arg9[%c0_48, %157] : memref<64x1024xf32, #tpu.memory_space<vmem>>, vector<64x128xf32>
    %cst_49 = arith.constant dense<0.000000e+00> : vector<64x128xf32>
    %159 = tpu.matmul %8, %154, %cst_49 {dimension_numbers = #tpu.dot_dimension_numbers<[1], [0], [0], [1], [0, 0, 1, 1], [], []>} : vector<64x16xf32>, vector<16x128xf32>, vector<64x128xf32> -> vector<64x128xf32>
    %160 = arith.addf %158, %159 : vector<64x128xf32>
    %161 = vector.extract_strided_slice %160 {offsets = [0, 0], sizes = [48, 128], strides = [1, 1]} : vector<64x128xf32> to vector<48x128xf32>
    %cst_50 = arith.constant 5.000000e-01 : f32
    %162 = vector.broadcast %cst_50 : f32 to vector<48x128xf32>
    %163 = arith.mulf %162, %161 : vector<48x128xf32>
    %164 = math.tanh %163 : vector<48x128xf32>
    %cst_51 = arith.constant 5.000000e-01 : f32
    %165 = vector.broadcast %cst_51 : f32 to vector<48x128xf32>
    %166 = arith.mulf %165, %164 : vector<48x128xf32>
    %cst_52 = arith.constant 5.000000e-01 : f32
    %167 = vector.broadcast %cst_52 : f32 to vector<48x128xf32>
    %168 = arith.addf %166, %167 : vector<48x128xf32>
    %169 = vector.extract_strided_slice %168 {offsets = [0, 0], sizes = [16, 128], strides = [1, 1]} : vector<48x128xf32> to vector<16x128xf32>
    %170 = vector.extract_strided_slice %168 {offsets = [16, 0], sizes = [16, 128], strides = [1, 1]} : vector<48x128xf32> to vector<16x128xf32>
    %171 = vector.extract_strided_slice %168 {offsets = [32, 0], sizes = [16, 128], strides = [1, 1]} : vector<48x128xf32> to vector<16x128xf32>
    %172 = vector.extract_strided_slice %160 {offsets = [48, 0], sizes = [16, 128], strides = [1, 1]} : vector<64x128xf32> to vector<16x128xf32>
    %173 = math.tanh %172 : vector<16x128xf32>
    %174 = arith.mulf %170, %152 : vector<16x128xf32>
    %175 = arith.mulf %169, %173 : vector<16x128xf32>
    %176 = arith.addf %174, %175 : vector<16x128xf32>
    %177 = math.tanh %176 : vector<16x128xf32>
    %178 = arith.mulf %171, %177 : vector<16x128xf32>
    %c7_i32 = arith.constant 7 : i32
    %c128_i32_53 = arith.constant 128 : i32
    %179 = arith.muli %c7_i32, %c128_i32_53 : i32
    %180 = tpu.assume_multiple %179, 128 : i32
    %c0_54 = arith.constant 0 : index
    %181 = arith.index_cast %180 : i32 to index
    %182 = vector.load %arg9[%c0_54, %181] : memref<64x1024xf32, #tpu.memory_space<vmem>>, vector<64x128xf32>
    %cst_55 = arith.constant dense<0.000000e+00> : vector<64x128xf32>
    %183 = tpu.matmul %8, %178, %cst_55 {dimension_numbers = #tpu.dot_dimension_numbers<[1], [0], [0], [1], [0, 0, 1, 1], [], []>} : vector<64x16xf32>, vector<16x128xf32>, vector<64x128xf32> -> vector<64x128xf32>
    %184 = arith.addf %182, %183 : vector<64x128xf32>
    %185 = vector.extract_strided_slice %184 {offsets = [0, 0], sizes = [48, 128], strides = [1, 1]} : vector<64x128xf32> to vector<48x128xf32>
    %cst_56 = arith.constant 5.000000e-01 : f32
    %186 = vector.broadcast %cst_56 : f32 to vector<48x128xf32>
    %187 = arith.mulf %186, %185 : vector<48x128xf32>
    %188 = math.tanh %187 : vector<48x128xf32>
    %cst_57 = arith.constant 5.000000e-01 : f32
    %189 = vector.broadcast %cst_57 : f32 to vector<48x128xf32>
    %190 = arith.mulf %189, %188 : vector<48x128xf32>
    %cst_58 = arith.constant 5.000000e-01 : f32
    %191 = vector.broadcast %cst_58 : f32 to vector<48x128xf32>
    %192 = arith.addf %190, %191 : vector<48x128xf32>
    %193 = vector.extract_strided_slice %192 {offsets = [0, 0], sizes = [16, 128], strides = [1, 1]} : vector<48x128xf32> to vector<16x128xf32>
    %194 = vector.extract_strided_slice %192 {offsets = [16, 0], sizes = [16, 128], strides = [1, 1]} : vector<48x128xf32> to vector<16x128xf32>
    %195 = vector.extract_strided_slice %192 {offsets = [32, 0], sizes = [16, 128], strides = [1, 1]} : vector<48x128xf32> to vector<16x128xf32>
    %196 = vector.extract_strided_slice %184 {offsets = [48, 0], sizes = [16, 128], strides = [1, 1]} : vector<64x128xf32> to vector<16x128xf32>
    %197 = math.tanh %196 : vector<16x128xf32>
    %198 = arith.mulf %194, %176 : vector<16x128xf32>
    %199 = arith.mulf %193, %197 : vector<16x128xf32>
    %200 = arith.addf %198, %199 : vector<16x128xf32>
    %201 = math.tanh %200 : vector<16x128xf32>
    %202 = arith.mulf %195, %201 : vector<16x128xf32>
    %c8_i32 = arith.constant 8 : i32
    %c0_59 = arith.constant 0 : index
    %c0_60 = arith.constant 0 : index
    %c0_61 = arith.constant 0 : index
    %203 = vector.load %arg6[%c0_59, %c0_60, %c0_61] : memref<1x8x16xf32, #tpu.memory_space<vmem>>, vector<1x8x16xf32>
    %204 = vector.shape_cast %203 : vector<1x8x16xf32> to vector<8x16xf32>
    %cst_62 = arith.constant dense<0.000000e+00> : vector<8x128xf32>
    %205 = tpu.matmul %204, %202, %cst_62 {dimension_numbers = #tpu.dot_dimension_numbers<[1], [0], [0], [1], [0, 0, 1, 1], [], []>} : vector<8x16xf32>, vector<16x128xf32>, vector<8x128xf32> -> vector<8x128xf32>
    %c0_63 = arith.constant 0 : index
    %c0_64 = arith.constant 0 : index
    %c0_65 = arith.constant 0 : index
    %206 = vector.load %arg7[%c0_63, %c0_64, %c0_65] : memref<1x8x1xf32, #tpu.memory_space<vmem>>, vector<1x8x1xf32>
    %207 = vector.shape_cast %206 : vector<1x8x1xf32> to vector<8x1xf32>
    %208 = vector.broadcast %207 : vector<8x1xf32> to vector<8x128xf32>
    %209 = arith.addf %205, %208 : vector<8x128xf32>
    %c0_66 = arith.constant 0 : index
    %c0_67 = arith.constant 0 : index
    %210 = vector.load %arg8[%c0_66, %c0_67] : memref<8x128xf32, #tpu.memory_space<vmem>>, vector<8x128xf32>
    tpu.vector_store %arg8[%c0_66, %c0_67], %209 {strides = array<i32>} : memref<8x128xf32, #tpu.memory_space<vmem>>, vector<8x128xf32>,
    return
  }
  func.func @transform_0(%arg0: i32, %arg1: memref<1xi32, #tpu.memory_space<smem>>) -> (i32, i32, i32) {
    %c0_i32 = arith.constant 0 : i32
    %c0_i32_0 = arith.constant 0 : i32
    %c0_i32_1 = arith.constant 0 : i32
    return %arg0, %c0_i32, %c0_i32_0 : i32, i32, i32
  }
  func.func @transform_1(%arg0: i32, %arg1: memref<1xi32, #tpu.memory_space<smem>>) -> (i32, i32) {
    %c0_i32 = arith.constant 0 : i32
    %c0_i32_0 = arith.constant 0 : i32
    %c0_i32_1 = arith.constant 0 : i32
    return %c0_i32, %c0_i32_0 : i32, i32
  }
  func.func @transform_2(%arg0: i32, %arg1: memref<1xi32, #tpu.memory_space<smem>>) -> (i32, i32) {
    %c0_i32 = arith.constant 0 : i32
    %c0_i32_0 = arith.constant 0 : i32
    %c0_i32_1 = arith.constant 0 : i32
    return %c0_i32, %c0_i32_0 : i32, i32
  }
  func.func @transform_3(%arg0: i32, %arg1: memref<1xi32, #tpu.memory_space<smem>>) -> (i32, i32) {
    %c0_i32 = arith.constant 0 : i32
    %c0_i32_0 = arith.constant 0 : i32
    %c0_i32_1 = arith.constant 0 : i32
    return %c0_i32, %c0_i32_0 : i32, i32
  }
  func.func @transform_4(%arg0: i32, %arg1: memref<1xi32, #tpu.memory_space<smem>>) -> (i32, i32, i32) {
    %c0 = arith.constant 0 : index
    %0 = memref.load %arg1[%c0] : memref<1xi32, #tpu.memory_space<smem>>
    %c0_i32 = arith.constant 0 : i32
    %c0_i32_0 = arith.constant 0 : i32
    %c0_i32_1 = arith.constant 0 : i32
    return %0, %c0_i32, %c0_i32_0 : i32, i32, i32
  }
  func.func @transform_5(%arg0: i32, %arg1: memref<1xi32, #tpu.memory_space<smem>>) -> (i32, i32, i32) {
    %c0 = arith.constant 0 : index
    %0 = memref.load %arg1[%c0] : memref<1xi32, #tpu.memory_space<smem>>
    %c0_i32 = arith.constant 0 : i32
    %c0_i32_0 = arith.constant 0 : i32
    %c0_i32_1 = arith.constant 0 : i32
    return %0, %c0_i32, %c0_i32_0 : i32, i32, i32
  }
  func.func @transform_6(%arg0: i32, %arg1: memref<1xi32, #tpu.memory_space<smem>>) -> (i32, i32) {
    %c0_i32 = arith.constant 0 : i32
    %c0_i32_0 = arith.constant 0 : i32
    return %c0_i32, %arg0 : i32, i32
  }
}

</mosaic_0001>

<llo_original>
// kernel: _forward_pallas.1
$region0: #{_forward_pallas.1}
  #allocation0 [shape = 'u32[]', space=smem, size = 0x4, offset = 0x4, fixed_abs, tag = 'smem constant byte address 0x4 - core index']
  #allocation1 [shape = 'u32[144,128]{1,0:T(1,128)}', space=vmem, size = 0x12000, scoped, tag = 'internal scratch']
  #allocation2 [shape = 'f32[64,1024]{1,0:T(8,128)}', space=vmem, size = 0x40000, scoped, tag = 'scratch operand']
  #allocation3 [shape = 's32[1]{0}', space=sflag, size = 0x4, scoped, tag = 'scoped memory for _forward_pallas.1']
  #allocation4 [shape = 's32[1]{0:T(128)S(6)}', space=smem, size = 0x200, scoped, tag = 'prefetched SMEM operand 0']
  %s0 = inlined_call_operand.<no memory space> [shape: s32[1], index: 0, kind: input, shape index: {}]
  %s1 = inlined_call_operand.vmem [shape: f32[1,8,1024], index: 1, kind: input, shape index: {}]
  %s2 = inlined_call_operand.vmem [shape: f32[64,8], index: 2, kind: input, shape index: {}]
  %s3 = inlined_call_operand.vmem [shape: f32[64,16], index: 3, kind: input, shape index: {}]
  %s4 = inlined_call_operand.vmem [shape: f32[64,1], index: 4, kind: input, shape index: {}]
  %s5 = inlined_call_operand.vmem [shape: f32[3,8,16], index: 5, kind: input, shape index: {}]
  %s6 = inlined_call_operand.vmem [shape: f32[3,8,1], index: 6, kind: input, shape index: {}]
  %s7 = inlined_call_operand.vmem [shape: f32[8,128], index: 7, kind: output, shape index: {}]
  %s8 = sld [smem:[#allocation0]]
  $region34: #{_forward_pallas.1} parent=0
    _
  %s10 = ssub.s32 1, %s8
  %s11 = scalar_select 0, %s10, %s8
  %12 = sst [smem:[#allocation4]] %s0
  // Predicated region
  $region2: #{_forward_pallas.1} parent=0 // pred_check
    _
  $region3: #{_forward_pallas.1} parent=0 // pred_check_branch
    %14 = sbr.rel (0) target = $region5
  $region4: #{_forward_pallas.1} parent=0 // pred_region
    _
  $region5: #{_forward_pallas.1} parent=0 // pred_fallthru
    _
  // Predicated region
  $region6: #{_forward_pallas.1} parent=0 // pred_check
    _
  $region7: #{_forward_pallas.1} parent=0 // pred_check_branch
    %16 = sbr.rel (0) target = $region9
  $region8: #{_forward_pallas.1} parent=0 // pred_region
    _
  $region9: #{_forward_pallas.1} parent=0 // pred_fallthru
    _
  // Predicated region
  $region10: #{_forward_pallas.1} parent=0 // pred_check
    _
  $region11: #{_forward_pallas.1} parent=0 // pred_check_branch
    %18 = sbr.rel (0) target = $region13
  $region12: #{_forward_pallas.1} parent=0 // pred_region
    _
  $region13: #{_forward_pallas.1} parent=0 // pred_fallthru
    _
  // Predicated region
  $region14: #{_forward_pallas.1} parent=0 // pred_check
    _
  $region15: #{_forward_pallas.1} parent=0 // pred_check_branch
    %20 = sbr.rel (0) target = $region17
  $region16: #{_forward_pallas.1} parent=0 // pred_region
    _
  $region17: #{_forward_pallas.1} parent=0 // pred_fallthru
    _
  // Predicated region
  $region18: #{_forward_pallas.1} parent=0 // pred_check
    _
  $region19: #{_forward_pallas.1} parent=0 // pred_check_branch
    %22 = sbr.rel (0) target = $region21
  $region20: #{_forward_pallas.1} parent=0 // pred_region
    %s23 = sld [smem:[#allocation4]]
    %p24 = scmp.lt.s32.totalorder %s23, 2
    %s25 = scalar_select %p24, %s23, 2
    %s26 = smul.addr %s25, 8
    %s27 = scalar_lea.vmem %s5, %s26
    %s28 = sld [smem:[#allocation4]]
  $region21: #{_forward_pallas.1} parent=0 // pred_fallthru
    _
  // Predicated region
  $region22: #{_forward_pallas.1} parent=0 // pred_check
    _
  $region23: #{_forward_pallas.1} parent=0 // pred_check_branch
    %30 = sbr.rel (0) target = $region25
  $region24: #{_forward_pallas.1} parent=0 // pred_region
    %s31 = sld [smem:[#allocation4]]
    %p32 = scmp.lt.s32.totalorder %s31, 2
    %s33 = scalar_select %p32, %s31, 2
    %s34 = smul.addr %s33, 8
    %s35 = scalar_lea.vmem %s6, %s34
    %s36 = sld [smem:[#allocation4]]
  $region25: #{_forward_pallas.1} parent=0 // pred_fallthru
    _
  %s37 = sld [smem:[#allocation4]]
  %p38 = scmp.lt.s32.totalorder %s37, 2
  %s39 = scalar_select %p38, %s37, 2
  %s40 = smul.addr %s39, 8
  %s41 = scalar_lea.vmem %s5, %s40
  %s42 = sld [smem:[#allocation4]]
  %p43 = scmp.lt.s32.totalorder %s42, 2
  %s44 = scalar_select %p43, %s42, 2
  %s45 = smul.addr %s44, 8
  %s46 = scalar_lea.vmem %s6, %s45
  %s47 = sld [smem:[#allocation4]]
  %p48 = scmp.lt.s32.totalorder %s47, 2
  %s49 = scalar_select %p48, %s47, 2
  %s50 = smul.addr %s49, 8
  %s51 = scalar_lea.vmem %s5, %s50
  %s52 = sld [smem:[#allocation4]]
  %s53 = sld [smem:[#allocation4]]
  %p54 = scmp.lt.s32.totalorder %s53, 2
  %s55 = scalar_select %p54, %s53, 2
  %s56 = smul.addr %s55, 8
  %s57 = scalar_lea.vmem %s6, %s56
  %s58 = sld [smem:[#allocation4]]
  %v59 = vld [vmem:[%s2] sm:$0xff]
  %v60 = vld [vmem:[%s2 + $0x8] sm:$0xff]
  %v61 = vld [vmem:[%s2 + $0x10] sm:$0xff]
  %v62 = vld [vmem:[%s2 + $0x18] sm:$0xff]
  %v63 = vld [vmem:[%s2 + $0x20] sm:$0xff]
  %v64 = vld [vmem:[%s2 + $0x28] sm:$0xff]
  %v65 = vld [vmem:[%s2 + $0x30] sm:$0xff]
  %v66 = vld [vmem:[%s2 + $0x38] sm:$0xff]
  %v67 = vld [vmem:[%s1] sm:$0xff]
  %v68 = vld [vmem:[%s1 + $0x8] sm:$0xff]
  %v69 = vld [vmem:[%s1 + $0x10] sm:$0xff]
  %v70 = vld [vmem:[%s1 + $0x18] sm:$0xff]
  %v71 = vld [vmem:[%s1 + $0x20] sm:$0xff]
  %v72 = vld [vmem:[%s1 + $0x28] sm:$0xff]
  %v73 = vld [vmem:[%s1 + $0x30] sm:$0xff]
  %v74 = vld [vmem:[%s1 + $0x38] sm:$0xff]
  %v75 = vld [vmem:[%s4] sm:$0xff]
  %v76 = vld [vmem:[%s4 + $0x8] sm:$0xff]
  %v77 = vld [vmem:[%s4 + $0x10] sm:$0xff]
  %v78 = vld [vmem:[%s4 + $0x18] sm:$0xff]
  %v79 = vld [vmem:[%s4 + $0x20] sm:$0xff]
  %v80 = vld [vmem:[%s4 + $0x28] sm:$0xff]
  %v81 = vld [vmem:[%s4 + $0x30] sm:$0xff]
  %v82 = vld [vmem:[%s4 + $0x38] sm:$0xff]
  %84 = vset.pattern.permute.xlu0 0
  %85 = vperm.xlu0 %84, %v75
  %v86 = vpop.permute.xlu0 %85
  %89 = vset.pattern.permute.xlu0 0
  %90 = vperm.xlu0 %89, %v76
  %v91 = vpop.permute.xlu0 %90
  %94 = vset.pattern.permute.xlu0 0
  %95 = vperm.xlu0 %94, %v77
  %v96 = vpop.permute.xlu0 %95
  %99 = vset.pattern.permute.xlu0 0
  %100 = vperm.xlu0 %99, %v78
  %v101 = vpop.permute.xlu0 %100
  %104 = vset.pattern.permute.xlu0 0
  %105 = vperm.xlu0 %104, %v79
  %v106 = vpop.permute.xlu0 %105
  %109 = vset.pattern.permute.xlu0 0
  %110 = vperm.xlu0 %109, %v80
  %v111 = vpop.permute.xlu0 %110
  %114 = vset.pattern.permute.xlu0 0
  %115 = vperm.xlu0 %114, %v81
  %v116 = vpop.permute.xlu0 %115
  %119 = vset.pattern.permute.xlu0 0
  %120 = vperm.xlu0 %119, %v82
  %v121 = vpop.permute.xlu0 %120
  %vm123 = vcmask 64512
  %v125 = vsel %vm123, %v59, 0
  %v128 = vsel %vm123, %v60, 0
  %v131 = vsel %vm123, %v61, 0
  %v134 = vsel %vm123, %v62, 0
  %v137 = vsel %vm123, %v63, 0
  %v140 = vsel %vm123, %v64, 0
  %v143 = vsel %vm123, %v65, 0
  %v146 = vsel %vm123, %v66, 0
  %148 = vmatprep.subr.mxu0 %v68
  %149 = vmatpush1.msra.mxu0 %v67
  %150 = vmatprep.subr.mxu0 0.0
  %151 = vmatpush1.msra.mxu0 0.0
  %152 = vmatprep.subr.mxu0 0.0
  %153 = vmatpush1.msra.mxu0 0.0
  %154 = vmatprep.subr.mxu0 0.0
  %155 = vmatpush1.msra.mxu0 0.0
  %156 = vmatprep.subr.mxu0 0.0
  %157 = vmatpush1.msra.mxu0 0.0
  %158 = vmatprep.subr.mxu0 0.0
  %159 = vmatpush1.msra.mxu0 0.0
  %160 = vmatprep.subr.mxu0 0.0
  %161 = vmatpush1.msra.mxu0 0.0
  %162 = vmatprep.subr.mxu0 0.0
  %163 = vmatpush1.msra.mxu0 0.0
  %164 = vmatprep.subr.mxu0 0.0
  %165 = vmatpush1.msra.mxu0 0.0
  %166 = vmatprep.subr.mxu0 0.0
  %167 = vmatpush1.msra.mxu0 0.0
  %168 = vmatprep.subr.mxu0 0.0
  %169 = vmatpush1.msra.mxu0 0.0
  %170 = vmatprep.subr.mxu0 0.0
  %171 = vmatpush1.msra.mxu0 0.0
  %172 = vmatprep.subr.mxu0 0.0
  %173 = vmatpush1.msra.mxu0 0.0
  %174 = vmatprep.subr.mxu0 0.0
  %175 = vmatpush1.msra.mxu0 0.0
  %176 = vmatprep.subr.mxu0 0.0
  %177 = vmatpush1.msra.mxu0 0.0
  %178 = vmatprep.subr.mxu0 0.0
  %179 = vmatpush1.msra.mxu0 0.0
  %180 = vmatprep.subr.mxu0 0.0
  %181 = vmatpush1.msra.mxu0 0.0
  %182 = vmatprep.subr.mxu0 0.0
  %183 = vmatpush1.msra.mxu0 0.0
  %184 = vmatprep.subr.mxu0 0.0
  %185 = vmatpush1.msra.mxu0 0.0
  %186 = vmatprep.subr.mxu0 0.0
  %187 = vmatpush1.msra.mxu0 0.0
  %188 = vmatprep.subr.mxu0 0.0
  %189 = vmatpush1.msra.mxu0 0.0
  %190 = vmatprep.subr.mxu0 0.0
  %191 = vmatpush1.msra.mxu0 0.0
  %192 = vmatprep.subr.mxu0 0.0
  %193 = vmatpush1.msra.mxu0 0.0
  %194 = vmatprep.subr.mxu0 0.0
  %195 = vmatpush1.msra.mxu0 0.0
  %196 = vmatprep.subr.mxu0 0.0
  %197 = vmatpush1.msra.mxu0 0.0
  %198 = vmatprep.subr.mxu0 0.0
  %199 = vmatpush1.msra.mxu0 0.0
  %200 = vmatprep.subr.mxu0 0.0
  %201 = vmatpush1.msra.mxu0 0.0
  %202 = vmatprep.subr.mxu0 0.0
  %203 = vmatpush1.msra.mxu0 0.0
  %204 = vmatprep.subr.mxu0 0.0
  %205 = vmatpush1.msra.mxu0 0.0
  %206 = vmatprep.subr.mxu0 0.0
  %207 = vmatpush1.msra.mxu0 0.0
  %208 = vmatprep.subr.mxu0 0.0
  %209 = vmatpush1.msra.mxu0 0.0
  %210 = vmatprep.subr.mxu0 0.0
  %211 = vmatpush1.msra.mxu0 0.0
  %212 = vmatprep.mubr.f32.mxu0 0.0
  %213 = vmatmul.mubr.f32.gmra.mrb[0].mxu0 %v125
  %v214 = vpop.f32.mrb[0].mxu0
  %v215 = vadd.f32 %v86, %v214
  %v216 = vpop.f32.mrb[0].mxu0
  %v217 = vadd.f32 %v86, %v216
  %218 = vmatprep.mubr.f32.mxu0 0.0
  %219 = vmatmul.mubr.f32.gmra.mrb[0].mxu0 %v128
  %v220 = vpop.f32.mrb[0].mxu0
  %v221 = vadd.f32 %v91, %v220
  %v222 = vpop.f32.mrb[0].mxu0
  %v223 = vadd.f32 %v91, %v222
  %224 = vmatprep.mubr.f32.mxu0 0.0
  %225 = vmatmul.mubr.f32.gmra.mrb[0].mxu0 %v131
  %v226 = vpop.f32.mrb[0].mxu0
  %v227 = vadd.f32 %v96, %v226
  %v228 = vpop.f32.mrb[0].mxu0
  %v229 = vadd.f32 %v96, %v228
  %230 = vmatprep.mubr.f32.mxu0 0.0
  %231 = vmatmul.mubr.f32.gmra.mrb[0].mxu0 %v134
  %v232 = vpop.f32.mrb[0].mxu0
  %v233 = vadd.f32 %v101, %v232
  %v234 = vpop.f32.mrb[0].mxu0
  %v235 = vadd.f32 %v101, %v234
  %236 = vmatprep.mubr.f32.mxu0 0.0
  %237 = vmatmul.mubr.f32.gmra.mrb[0].mxu0 %v137
  %v238 = vpop.f32.mrb[0].mxu0
  %v239 = vadd.f32 %v106, %v238
  %v240 = vpop.f32.mrb[0].mxu0
  %v241 = vadd.f32 %v106, %v240
  %242 = vmatprep.mubr.f32.mxu0 0.0
  %243 = vmatmul.mubr.f32.gmra.mrb[0].mxu0 %v140
  %v244 = vpop.f32.mrb[0].mxu0
  %v245 = vadd.f32 %v111, %v244
  %v246 = vpop.f32.mrb[0].mxu0
  %v247 = vadd.f32 %v111, %v246
  %248 = vmatprep.mubr.f32.mxu0 0.0
  %249 = vmatmul.mubr.f32.gmra.mrb[0].mxu0 %v143
  %v250 = vpop.f32.mrb[0].mxu0
  %v251 = vadd.f32 %v116, %v250
  %v252 = vpop.f32.mrb[0].mxu0
  %v253 = vadd.f32 %v116, %v252
  %254 = vmatprep.mubr.f32.mxu0 0.0
  %255 = vmatmul.mubr.f32.gmra.mrb[0].mxu0 %v146
  %v256 = vpop.f32.mrb[0].mxu0
  %v257 = vadd.f32 %v121, %v256
  %v258 = vpop.f32.mrb[0].mxu0
  %v259 = vadd.f32 %v121, %v258
  %260 = vdwg.mxu0
  %261 = vmatprep.subr.mxu0 %v70
  %262 = vmatpush1.msra.mxu0 %v69
  %263 = vmatprep.subr.mxu0 0.0
  %264 = vmatpush1.msra.mxu0 0.0
  %265 = vmatprep.subr.mxu0 0.0
  %266 = vmatpush1.msra.mxu0 0.0
  %267 = vmatprep.subr.mxu0 0.0
  %268 = vmatpush1.msra.mxu0 0.0
  %269 = vmatprep.subr.mxu0 0.0
  %270 = vmatpush1.msra.mxu0 0.0
  %271 = vmatprep.subr.mxu0 0.0
  %272 = vmatpush1.msra.mxu0 0.0
  %273 = vmatprep.subr.mxu0 0.0
  %274 = vmatpush1.msra.mxu0 0.0
  %275 = vmatprep.subr.mxu0 0.0
  %276 = vmatpush1.msra.mxu0 0.0
  %277 = vmatprep.subr.mxu0 0.0
  %278 = vmatpush1.msra.mxu0 0.0
  %279 = vmatprep.subr.mxu0 0.0
  %280 = vmatpush1.msra.mxu0 0.0
  %281 = vmatprep.subr.mxu0 0.0
  %282 = vmatpush1.msra.mxu0 0.0
  %283 = vmatprep.subr.mxu0 0.0
  %284 = vmatpush1.msra.mxu0 0.0
  %285 = vmatprep.subr.mxu0 0.0
  %286 = vmatpush1.msra.mxu0 0.0
  %287 = vmatprep.subr.mxu0 0.0
  %288 = vmatpush1.msra.mxu0 0.0
  %289 = vmatprep.subr.mxu0 0.0
  %290 = vmatpush1.msra.mxu0 0.0
  %291 = vmatprep.subr.mxu0 0.0
  %292 = vmatpush1.msra.mxu0 0.0
  %293 = vmatprep.subr.mxu0 0.0
  %294 = vmatpush1.msra.mxu0 0.0
  %295 = vmatprep.subr.mxu0 0.0
  %296 = vmatpush1.msra.mxu0 0.0
  %297 = vmatprep.subr.mxu0 0.0
  %298 = vmatpush1.msra.mxu0 0.0
  %299 = vmatprep.subr.mxu0 0.0
  %300 = vmatpush1.msra.mxu0 0.0
  %301 = vmatprep.subr.mxu0 0.0
  %302 = vmatpush1.msra.mxu0 0.0
  %303 = vmatprep.subr.mxu0 0.0
  %304 = vmatpush1.msra.mxu0 0.0
  %305 = vmatprep.subr.mxu0 0.0
  %306 = vmatpush1.msra.mxu0 0.0
  %307 = vmatprep.subr.mxu0 0.0
  %308 = vmatpush1.msra.mxu0 0.0
  %309 = vmatprep.subr.mxu0 0.0
  %310 = vmatpush1.msra.mxu0 0.0
  %311 = vmatprep.subr.mxu0 0.0
  %312 = vmatpush1.msra.mxu0 0.0
  %313 = vmatprep.subr.mxu0 0.0
  %314 = vmatpush1.msra.mxu0 0.0
  %315 = vmatprep.subr.mxu0 0.0
  %316 = vmatpush1.msra.mxu0 0.0
  %317 = vmatprep.subr.mxu0 0.0
  %318 = vmatpush1.msra.mxu0 0.0
  %319 = vmatprep.subr.mxu0 0.0
  %320 = vmatpush1.msra.mxu0 0.0
  %321 = vmatprep.subr.mxu0 0.0
  %322 = vmatpush1.msra.mxu0 0.0
  %323 = vmatprep.subr.mxu0 0.0
  %324 = vmatpush1.msra.mxu0 0.0
  %325 = vmatprep.mubr.f32.mxu0 0.0
  %326 = vmatmul.mubr.f32.gmra.mrb[0].mxu0 %v125
  %v327 = vpop.f32.mrb[0].mxu0
  %v328 = vadd.f32 %v86, %v327
  %v329 = vpop.f32.mrb[0].mxu0
  %v330 = vadd.f32 %v86, %v329
  %331 = vmatprep.mubr.f32.mxu0 0.0
  %332 = vmatmul.mubr.f32.gmra.mrb[0].mxu0 %v128
  %v333 = vpop.f32.mrb[0].mxu0
  %v334 = vadd.f32 %v91, %v333
  %v335 = vpop.f32.mrb[0].mxu0
  %v336 = vadd.f32 %v91, %v335
  %337 = vmatprep.mubr.f32.mxu0 0.0
  %338 = vmatmul.mubr.f32.gmra.mrb[0].mxu0 %v131
  %v339 = vpop.f32.mrb[0].mxu0
  %v340 = vadd.f32 %v96, %v339
  %v341 = vpop.f32.mrb[0].mxu0
  %v342 = vadd.f32 %v96, %v341
  %343 = vmatprep.mubr.f32.mxu0 0.0
  %344 = vmatmul.mubr.f32.gmra.mrb[0].mxu0 %v134
  %v345 = vpop.f32.mrb[0].mxu0
  %v346 = vadd.f32 %v101, %v345
  %v347 = vpop.f32.mrb[0].mxu0
  %v348 = vadd.f32 %v101, %v347
  %349 = vmatprep.mubr.f32.mxu0 0.0
  %350 = vmatmul.mubr.f32.gmra.mrb[0].mxu0 %v137
  %v351 = vpop.f32.mrb[0].mxu0
  %v352 = vadd.f32 %v106, %v351
  %v353 = vpop.f32.mrb[0].mxu0
  %v354 = vadd.f32 %v106, %v353
  %355 = vmatprep.mubr.f32.mxu0 0.0
  %356 = vmatmul.mubr.f32.gmra.mrb[0].mxu0 %v140
  %v357 = vpop.f32.mrb[0].mxu0
  %v358 = vadd.f32 %v111, %v357
  %v359 = vpop.f32.mrb[0].mxu0
  %v360 = vadd.f32 %v111, %v359
  %361 = vmatprep.mubr.f32.mxu0 0.0
  %362 = vmatmul.mubr.f32.gmra.mrb[0].mxu0 %v143
  %v363 = vpop.f32.mrb[0].mxu0
  %v364 = vadd.f32 %v116, %v363
  %v365 = vpop.f32.mrb[0].mxu0
  %v366 = vadd.f32 %v116, %v365
  %367 = vmatprep.mubr.f32.mxu0 0.0
  %368 = vmatmul.mubr.f32.gmra.mrb[0].mxu0 %v146
  %v369 = vpop.f32.mrb[0].mxu0
  %v370 = vadd.f32 %v121, %v369
  %v371 = vpop.f32.mrb[0].mxu0
  %v372 = vadd.f32 %v121, %v371
  %373 = vdwg.mxu0
  %374 = vmatprep.subr.mxu0 %v72
  %375 = vmatpush1.msra.mxu0 %v71
  %376 = vmatprep.subr.mxu0 0.0
  %377 = vmatpush1.msra.mxu0 0.0
  %378 = vmatprep.subr.mxu0 0.0
  %379 = vmatpush1.msra.mxu0 0.0
  %380 = vmatprep.subr.mxu0 0.0
  %381 = vmatpush1.msra.mxu0 0.0
  %382 = vmatprep.subr.mxu0 0.0
  %383 = vmatpush1.msra.mxu0 0.0
  %384 = vmatprep.subr.mxu0 0.0
  %385 = vmatpush1.msra.mxu0 0.0
  %386 = vmatprep.subr.mxu0 0.0
  %387 = vmatpush1.msra.mxu0 0.0
  %388 = vmatprep.subr.mxu0 0.0
  %389 = vmatpush1.msra.mxu0 0.0
  %390 = vmatprep.subr.mxu0 0.0
  %391 = vmatpush1.msra.mxu0 0.0
  %392 = vmatprep.subr.mxu0 0.0
  %393 = vmatpush1.msra.mxu0 0.0
  %394 = vmatprep.subr.mxu0 0.0
  %395 = vmatpush1.msra.mxu0 0.0
  %396 = vmatprep.subr.mxu0 0.0
  %397 = vmatpush1.msra.mxu0 0.0
  %398 = vmatprep.subr.mxu0 0.0
  %399 = vmatpush1.msra.mxu0 0.0
  %400 = vmatprep.subr.mxu0 0.0
  %401 = vmatpush1.msra.mxu0 0.0
  %402 = vmatprep.subr.mxu0 0.0
  %403 = vmatpush1.msra.mxu0 0.0
  %404 = vmatprep.subr.mxu0 0.0
  %405 = vmatpush1.msra.mxu0 0.0
  %406 = vmatprep.subr.mxu0 0.0
  %407 = vmatpush1.msra.mxu0 0.0
  %408 = vmatprep.subr.mxu0 0.0
  %409 = vmatpush1.msra.mxu0 0.0
  %410 = vmatprep.subr.mxu0 0.0
  %411 = vmatpush1.msra.mxu0 0.0
  %412 = vmatprep.subr.mxu0 0.0
  %413 = vmatpush1.msra.mxu0 0.0
  %414 = vmatprep.subr.mxu0 0.0
  %415 = vmatpush1.msra.mxu0 0.0
  %416 = vmatprep.subr.mxu0 0.0
  %417 = vmatpush1.msra.mxu0 0.0
  %418 = vmatprep.subr.mxu0 0.0
  %419 = vmatpush1.msra.mxu0 0.0
  %420 = vmatprep.subr.mxu0 0.0
  %421 = vmatpush1.msra.mxu0 0.0
  %422 = vmatprep.subr.mxu0 0.0
  %423 = vmatpush1.msra.mxu0 0.0
  %424 = vmatprep.subr.mxu0 0.0
  %425 = vmatpush1.msra.mxu0 0.0
  %426 = vmatprep.subr.mxu0 0.0
  %427 = vmatpush1.msra.mxu0 0.0
  %428 = vmatprep.subr.mxu0 0.0
  %429 = vmatpush1.msra.mxu0 0.0
  %430 = vmatprep.subr.mxu0 0.0
  %431 = vmatpush1.msra.mxu0 0.0
  %432 = vmatprep.subr.mxu0 0.0
  %433 = vmatpush1.msra.mxu0 0.0
  %434 = vmatprep.subr.mxu0 0.0
  %435 = vmatpush1.msra.mxu0 0.0
  %436 = vmatprep.subr.mxu0 0.0
  %437 = vmatpush1.msra.mxu0 0.0
  %438 = vmatprep.mubr.f32.mxu0 0.0
  %439 = vmatmul.mubr.f32.gmra.mrb[0].mxu0 %v125
  %v440 = vpop.f32.mrb[0].mxu0
  %v441 = vadd.f32 %v86, %v440
  %v442 = vpop.f32.mrb[0].mxu0
  %v443 = vadd.f32 %v86, %v442
  %444 = vmatprep.mubr.f32.mxu0 0.0
  %445 = vmatmul.mubr.f32.gmra.mrb[0].mxu0 %v128
  %v446 = vpop.f32.mrb[0].mxu0
  %v447 = vadd.f32 %v91, %v446
  %v448 = vpop.f32.mrb[0].mxu0
  %v449 = vadd.f32 %v91, %v448
  %450 = vmatprep.mubr.f32.mxu0 0.0
  %451 = vmatmul.mubr.f32.gmra.mrb[0].mxu0 %v131
  %v452 = vpop.f32.mrb[0].mxu0
  %v453 = vadd.f32 %v96, %v452
  %v454 = vpop.f32.mrb[0].mxu0
  %v455 = vadd.f32 %v96, %v454
  %456 = vmatprep.mubr.f32.mxu0 0.0
  %457 = vmatmul.mubr.f32.gmra.mrb[0].mxu0 %v134
  %v458 = vpop.f32.mrb[0].mxu0
  %v459 = vadd.f32 %v101, %v458
  %v460 = vpop.f32.mrb[0].mxu0
  %v461 = vadd.f32 %v101, %v460
  %462 = vmatprep.mubr.f32.mxu0 0.0
  %463 = vmatmul.mubr.f32.gmra.mrb[0].mxu0 %v137
  %v464 = vpop.f32.mrb[0].mxu0
  %v465 = vadd.f32 %v106, %v464
  %v466 = vpop.f32.mrb[0].mxu0
  %v467 = vadd.f32 %v106, %v466
  %468 = vmatprep.mubr.f32.mxu0 0.0
  %469 = vmatmul.mubr.f32.gmra.mrb[0].mxu0 %v140
  %v470 = vpop.f32.mrb[0].mxu0
  %v471 = vadd.f32 %v111, %v470
  %v472 = vpop.f32.mrb[0].mxu0
  %v473 = vadd.f32 %v111, %v472
  %474 = vmatprep.mubr.f32.mxu0 0.0
  %475 = vmatmul.mubr.f32.gmra.mrb[0].mxu0 %v143
  %v476 = vpop.f32.mrb[0].mxu0
  %v477 = vadd.f32 %v116, %v476
  %v478 = vpop.f32.mrb[0].mxu0
  %v479 = vadd.f32 %v116, %v478
  %480 = vmatprep.mubr.f32.mxu0 0.0
  %481 = vmatmul.mubr.f32.gmra.mrb[0].mxu0 %v146
  %v482 = vpop.f32.mrb[0].mxu0
  %v483 = vadd.f32 %v121, %v482
  %v484 = vpop.f32.mrb[0].mxu0
  %v485 = vadd.f32 %v121, %v484
  %486 = vdwg.mxu0
  %487 = vmatprep.subr.mxu0 %v74
  %488 = vmatpush1.msra.mxu0 %v73
  %489 = vmatprep.subr.mxu0 0.0
  %490 = vmatpush1.msra.mxu0 0.0
  %491 = vmatprep.subr.mxu0 0.0
  %492 = vmatpush1.msra.mxu0 0.0
  %493 = vmatprep.subr.mxu0 0.0
  %494 = vmatpush1.msra.mxu0 0.0
  %495 = vmatprep.subr.mxu0 0.0
  %496 = vmatpush1.msra.mxu0 0.0
  %497 = vmatprep.subr.mxu0 0.0
  %498 = vmatpush1.msra.mxu0 0.0
  %499 = vmatprep.subr.mxu0 0.0
  %500 = vmatpush1.msra.mxu0 0.0
  %501 = vmatprep.subr.mxu0 0.0
  %502 = vmatpush1.msra.mxu0 0.0
  %503 = vmatprep.subr.mxu0 0.0
  %504 = vmatpush1.msra.mxu0 0.0
  %505 = vmatprep.subr.mxu0 0.0
  %506 = vmatpush1.msra.mxu0 0.0
  %507 = vmatprep.subr.mxu0 0.0
  %508 = vmatpush1.msra.mxu0 0.0
  %509 = vmatprep.subr.mxu0 0.0
  %510 = vmatpush1.msra.mxu0 0.0
  %511 = vmatprep.subr.mxu0 0.0
  %512 = vmatpush1.msra.mxu0 0.0
  %513 = vmatprep.subr.mxu0 0.0
  %514 = vmatpush1.msra.mxu0 0.0
  %515 = vmatprep.subr.mxu0 0.0
  %516 = vmatpush1.msra.mxu0 0.0
  %517 = vmatprep.subr.mxu0 0.0
  %518 = vmatpush1.msra.mxu0 0.0
  %519 = vmatprep.subr.mxu0 0.0
  %520 = vmatpush1.msra.mxu0 0.0
  %521 = vmatprep.subr.mxu0 0.0
  %522 = vmatpush1.msra.mxu0 0.0
  %523 = vmatprep.subr.mxu0 0.0
  %524 = vmatpush1.msra.mxu0 0.0
  %525 = vmatprep.subr.mxu0 0.0
  %526 = vmatpush1.msra.mxu0 0.0
  %527 = vmatprep.subr.mxu0 0.0
  %528 = vmatpush1.msra.mxu0 0.0
  %529 = vmatprep.subr.mxu0 0.0
  %530 = vmatpush1.msra.mxu0 0.0
  %531 = vmatprep.subr.mxu0 0.0
  %532 = vmatpush1.msra.mxu0 0.0
  %533 = vmatprep.subr.mxu0 0.0
  %534 = vmatpush1.msra.mxu0 0.0
  %535 = vmatprep.subr.mxu0 0.0
  %536 = vmatpush1.msra.mxu0 0.0
  %537 = vmatprep.subr.mxu0 0.0
  %538 = vmatpush1.msra.mxu0 0.0
  %539 = vmatprep.subr.mxu0 0.0
  %540 = vmatpush1.msra.mxu0 0.0
  %541 = vmatprep.subr.mxu0 0.0
  %542 = vmatpush1.msra.mxu0 0.0
  %543 = vmatprep.subr.mxu0 0.0
  %544 = vmatpush1.msra.mxu0 0.0
  %545 = vmatprep.subr.mxu0 0.0
  %546 = vmatpush1.msra.mxu0 0.0
  %547 = vmatprep.subr.mxu0 0.0
  %548 = vmatpush1.msra.mxu0 0.0
  %549 = vmatprep.subr.mxu0 0.0
  %550 = vmatpush1.msra.mxu0 0.0
  %551 = vmatprep.mubr.f32.mxu0 0.0
  %552 = vmatmul.mubr.f32.gmra.mrb[0].mxu0 %v125
  %v553 = vpop.f32.mrb[0].mxu0
  %v554 = vadd.f32 %v86, %v553
  %v555 = vpop.f32.mrb[0].mxu0
  %v556 = vadd.f32 %v86, %v555
  %557 = vmatprep.mubr.f32.mxu0 0.0
  %558 = vmatmul.mubr.f32.gmra.mrb[0].mxu0 %v128
  %v559 = vpop.f32.mrb[0].mxu0
  %v560 = vadd.f32 %v91, %v559
  %v561 = vpop.f32.mrb[0].mxu0
  %v562 = vadd.f32 %v91, %v561
  %563 = vmatprep.mubr.f32.mxu0 0.0
  %564 = vmatmul.mubr.f32.gmra.mrb[0].mxu0 %v131
  %v565 = vpop.f32.mrb[0].mxu0
  %v566 = vadd.f32 %v96, %v565
  %v567 = vpop.f32.mrb[0].mxu0
  %v568 = vadd.f32 %v96, %v567
  %569 = vmatprep.mubr.f32.mxu0 0.0
  %570 = vmatmul.mubr.f32.gmra.mrb[0].mxu0 %v134
  %v571 = vpop.f32.mrb[0].mxu0
  %v572 = vadd.f32 %v101, %v571
  %v573 = vpop.f32.mrb[0].mxu0
  %v574 = vadd.f32 %v101, %v573
  %575 = vmatprep.mubr.f32.mxu0 0.0
  %576 = vmatmul.mubr.f32.gmra.mrb[0].mxu0 %v137
  %v577 = vpop.f32.mrb[0].mxu0
  %v578 = vadd.f32 %v106, %v577
  %v579 = vpop.f32.mrb[0].mxu0
  %v580 = vadd.f32 %v106, %v579
  %581 = vmatprep.mubr.f32.mxu0 0.0
  %582 = vmatmul.mubr.f32.gmra.mrb[0].mxu0 %v140
  %v583 = vpop.f32.mrb[0].mxu0
  %v584 = vadd.f32 %v111, %v583
  %v585 = vpop.f32.mrb[0].mxu0
  %v586 = vadd.f32 %v111, %v585
  %587 = vmatprep.mubr.f32.mxu0 0.0
  %588 = vmatmul.mubr.f32.gmra.mrb[0].mxu0 %v143
  %v589 = vpop.f32.mrb[0].mxu0
  %v590 = vadd.f32 %v116, %v589
  %v591 = vpop.f32.mrb[0].mxu0
  %v592 = vadd.f32 %v116, %v591
  %593 = vmatprep.mubr.f32.mxu0 0.0
  %594 = vmatmul.mubr.f32.gmra.mrb[0].mxu0 %v146
  %v595 = vpop.f32.mrb[0].mxu0
  %v596 = vadd.f32 %v121, %v595
  %v597 = vpop.f32.mrb[0].mxu0
  %v598 = vadd.f32 %v121, %v597
  %599 = vdwg.mxu0
  %600 = vst [vmem:[#allocation2] sm:$0xff] %v215
  %601 = vst [vmem:[#allocation2 + $0x8] sm:$0xff] %v217
  %602 = vst [vmem:[#allocation2 + $0x10] sm:$0xff] %v328
  %603 = vst [vmem:[#allocation2 + $0x18] sm:$0xff] %v330
  %604 = vst [vmem:[#allocation2 + $0x20] sm:$0xff] %v441
  %605 = vst [vmem:[#allocation2 + $0x28] sm:$0xff] %v443
  %606 = vst [vmem:[#allocation2 + $0x30] sm:$0xff] %v554
  %607 = vst [vmem:[#allocation2 + $0x38] sm:$0xff] %v556
  %608 = vst [vmem:[#allocation2 + $0x40] sm:$0xff] %v221
  %609 = vst [vmem:[#allocation2 + $0x48] sm:$0xff] %v223
  %610 = vst [vmem:[#allocation2 + $0x50] sm:$0xff] %v334
  %611 = vst [vmem:[#allocation2 + $0x58] sm:$0xff] %v336
  %612 = vst [vmem:[#allocation2 + $0x60] sm:$0xff] %v447
  %613 = vst [vmem:[#allocation2 + $0x68] sm:$0xff] %v449
  %614 = vst [vmem:[#allocation2 + $0x70] sm:$0xff] %v560
  %615 = vst [vmem:[#allocation2 + $0x78] sm:$0xff] %v562
  %616 = vst [vmem:[#allocation2 + $0x80] sm:$0xff] %v227
  %617 = vst [vmem:[#allocation2 + $0x88] sm:$0xff] %v229
  %618 = vst [vmem:[#allocation2 + $0x90] sm:$0xff] %v340
  %619 = vst [vmem:[#allocation2 + $0x98] sm:$0xff] %v342
  %620 = vst [vmem:[#allocation2 + $0xa0] sm:$0xff] %v453
  %621 = vst [vmem:[#allocation2 + $0xa8] sm:$0xff] %v455
  %622 = vst [vmem:[#allocation2 + $0xb0] sm:$0xff] %v566
  %623 = vst [vmem:[#allocation2 + $0xb8] sm:$0xff] %v568
  %624 = vst [vmem:[#allocation2 + $0xc0] sm:$0xff] %v233
  %625 = vst [vmem:[#allocation2 + $0xc8] sm:$0xff] %v235
  %626 = vst [vmem:[#allocation2 + $0xd0] sm:$0xff] %v346
  %627 = vst [vmem:[#allocation2 + $0xd8] sm:$0xff] %v348
  %628 = vst [vmem:[#allocation2 + $0xe0] sm:$0xff] %v459
  %629 = vst [vmem:[#allocation2 + $0xe8] sm:$0xff] %v461
  %630 = vst [vmem:[#allocation2 + $0xf0] sm:$0xff] %v572
  %631 = vst [vmem:[#allocation2 + $0xf8] sm:$0xff] %v574
  %632 = vst [vmem:[#allocation2 + $0x100] sm:$0xff] %v239
  %633 = vst [vmem:[#allocation2 + $0x108] sm:$0xff] %v241
  %634 = vst [vmem:[#allocation2 + $0x110] sm:$0xff] %v352
  %635 = vst [vmem:[#allocation2 + $0x118] sm:$0xff] %v354
  %636 = vst [vmem:[#allocation2 + $0x120] sm:$0xff] %v465
  %637 = vst [vmem:[#allocation2 + $0x128] sm:$0xff] %v467
  %638 = vst [vmem:[#allocation2 + $0x130] sm:$0xff] %v578
  %639 = vst [vmem:[#allocation2 + $0x138] sm:$0xff] %v580
  %640 = vst [vmem:[#allocation2 + $0x140] sm:$0xff] %v245
  %641 = vst [vmem:[#allocation2 + $0x148] sm:$0xff] %v247
  %642 = vst [vmem:[#allocation2 + $0x150] sm:$0xff] %v358
  %643 = vst [vmem:[#allocation2 + $0x158] sm:$0xff] %v360
  %644 = vst [vmem:[#allocation2 + $0x160] sm:$0xff] %v471
  %645 = vst [vmem:[#allocation2 + $0x168] sm:$0xff] %v473
  %646 = vst [vmem:[#allocation2 + $0x170] sm:$0xff] %v584
  %647 = vst [vmem:[#allocation2 + $0x178] sm:$0xff] %v586
  %648 = vst [vmem:[#allocation2 + $0x180] sm:$0xff] %v251
  %649 = vst [vmem:[#allocation2 + $0x188] sm:$0xff] %v253
  %650 = vst [vmem:[#allocation2 + $0x190] sm:$0xff] %v364
  %651 = vst [vmem:[#allocation2 + $0x198] sm:$0xff] %v366
  %652 = vst [vmem:[#allocation2 + $0x1a0] sm:$0xff] %v477
  %653 = vst [vmem:[#allocation2 + $0x1a8] sm:$0xff] %v479
  %654 = vst [vmem:[#allocation2 + $0x1b0] sm:$0xff] %v590
  %655 = vst [vmem:[#allocation2 + $0x1b8] sm:$0xff] %v592
  %656 = vst [vmem:[#allocation2 + $0x1c0] sm:$0xff] %v257
  %657 = vst [vmem:[#allocation2 + $0x1c8] sm:$0xff] %v259
  %658 = vst [vmem:[#allocation2 + $0x1d0] sm:$0xff] %v370
  %659 = vst [vmem:[#allocation2 + $0x1d8] sm:$0xff] %v372
  %660 = vst [vmem:[#allocation2 + $0x1e0] sm:$0xff] %v483
  %661 = vst [vmem:[#allocation2 + $0x1e8] sm:$0xff] %v485
  %662 = vst [vmem:[#allocation2 + $0x1f0] sm:$0xff] %v596
  %663 = vst [vmem:[#allocation2 + $0x1f8] sm:$0xff] %v598
  %v664 = vld [vmem:[%s3] sm:$0xff]
  %v665 = vld [vmem:[%s3 + $0x8] sm:$0xff]
  %v666 = vld [vmem:[%s3 + $0x10] sm:$0xff]
  %v667 = vld [vmem:[%s3 + $0x18] sm:$0xff]
  %v668 = vld [vmem:[%s3 + $0x20] sm:$0xff]
  %v669 = vld [vmem:[%s3 + $0x28] sm:$0xff]
  %v670 = vld [vmem:[%s3 + $0x30] sm:$0xff]
  %v671 = vld [vmem:[%s3 + $0x38] sm:$0xff]
  %v672 = vld [vmem:[#allocation2] sm:$0xff]
  %v673 = vld [vmem:[#allocation2 + $0x40] sm:$0xff]
  %v674 = vld [vmem:[#allocation2 + $0x80] sm:$0xff]
  %v675 = vld [vmem:[#allocation2 + $0xc0] sm:$0xff]
  %v676 = vld [vmem:[#allocation2 + $0x100] sm:$0xff]
  %v677 = vld [vmem:[#allocation2 + $0x140] sm:$0xff]
  %v678 = vld [vmem:[#allocation2 + $0x180] sm:$0xff]
  %v679 = vld [vmem:[#allocation2 + $0x1c0] sm:$0xff]
  %vm680 = vcmask 130048
  %v682 = vsel %vm680, %v664, 0
  %v685 = vsel %vm680, %v665, 0
  %v688 = vsel %vm680, %v666, 0
  %v691 = vsel %vm680, %v667, 0
  %v694 = vsel %vm680, %v668, 0
  %v697 = vsel %vm680, %v669, 0
  %v700 = vsel %vm680, %v670, 0
  %v703 = vsel %vm680, %v671, 0
  %705 = vmatprep.subr.mxu0 0.0
  %706 = vmatpush1.msra.mxu0 0.0
  %707 = vmatprep.subr.mxu0 0.0
  %708 = vmatpush1.msra.mxu0 0.0
  %709 = vmatprep.subr.mxu0 0.0
  %710 = vmatpush1.msra.mxu0 0.0
  %711 = vmatprep.subr.mxu0 0.0
  %712 = vmatpush1.msra.mxu0 0.0
  %713 = vmatprep.subr.mxu0 0.0
  %714 = vmatpush1.msra.mxu0 0.0
  %715 = vmatprep.subr.mxu0 0.0
  %716 = vmatpush1.msra.mxu0 0.0
  %717 = vmatprep.subr.mxu0 0.0
  %718 = vmatpush1.msra.mxu0 0.0
  %719 = vmatprep.subr.mxu0 0.0
  %720 = vmatpush1.msra.mxu0 0.0
  %721 = vmatprep.subr.mxu0 0.0
  %722 = vmatpush1.msra.mxu0 0.0
  %723 = vmatprep.subr.mxu0 0.0
  %724 = vmatpush1.msra.mxu0 0.0
  %725 = vmatprep.subr.mxu0 0.0
  %726 = vmatpush1.msra.mxu0 0.0
  %727 = vmatprep.subr.mxu0 0.0
  %728 = vmatpush1.msra.mxu0 0.0
  %729 = vmatprep.subr.mxu0 0.0
  %730 = vmatpush1.msra.mxu0 0.0
  %731 = vmatprep.subr.mxu0 0.0
  %732 = vmatpush1.msra.mxu0 0.0
  %733 = vmatprep.subr.mxu0 0.0
  %734 = vmatpush1.msra.mxu0 0.0
  %735 = vmatprep.subr.mxu0 0.0
  %736 = vmatpush1.msra.mxu0 0.0
  %737 = vmatprep.subr.mxu0 0.0
  %738 = vmatpush1.msra.mxu0 0.0
  %739 = vmatprep.subr.mxu0 0.0
  %740 = vmatpush1.msra.mxu0 0.0
  %741 = vmatprep.subr.mxu0 0.0
  %742 = vmatpush1.msra.mxu0 0.0
  %743 = vmatprep.subr.mxu0 0.0
  %744 = vmatpush1.msra.mxu0 0.0
  %745 = vmatprep.subr.mxu0 0.0
  %746 = vmatpush1.msra.mxu0 0.0
  %747 = vmatprep.subr.mxu0 0.0
  %748 = vmatpush1.msra.mxu0 0.0
  %749 = vmatprep.subr.mxu0 0.0
  %750 = vmatpush1.msra.mxu0 0.0
  %751 = vmatprep.subr.mxu0 0.0
  %752 = vmatpush1.msra.mxu0 0.0
  %753 = vmatprep.subr.mxu0 0.0
  %754 = vmatpush1.msra.mxu0 0.0
  %755 = vmatprep.subr.mxu0 0.0
  %756 = vmatpush1.msra.mxu0 0.0
  %757 = vmatprep.subr.mxu0 0.0
  %758 = vmatpush1.msra.mxu0 0.0
  %759 = vmatprep.subr.mxu0 0.0
  %760 = vmatpush1.msra.mxu0 0.0
  %761 = vmatprep.subr.mxu0 0.0
  %762 = vmatpush1.msra.mxu0 0.0
  %763 = vmatprep.subr.mxu0 0.0
  %764 = vmatpush1.msra.mxu0 0.0
  %765 = vmatprep.subr.mxu0 0.0
  %766 = vmatpush1.msra.mxu0 0.0
  %767 = vmatprep.subr.mxu0 0.0
  %768 = vmatpush1.msra.mxu0 0.0
  %769 = vmatprep.mubr.f32.mxu0 0.0
  %770 = vmatmul.mubr.f32.gmra.mrb[0].mxu0 %v682
  %v771 = vpop.f32.mrb[0].mxu0
  %v772 = vadd.f32 0.0, %v771
  %v773 = vpop.f32.mrb[0].mxu0
  %774 = vmatprep.mubr.f32.mxu0 0.0
  %775 = vmatmul.mubr.f32.gmra.mrb[0].mxu0 %v685
  %v776 = vpop.f32.mrb[0].mxu0
  %v777 = vadd.f32 0.0, %v776
  %v778 = vpop.f32.mrb[0].mxu0
  %779 = vmatprep.mubr.f32.mxu0 0.0
  %780 = vmatmul.mubr.f32.gmra.mrb[0].mxu0 %v688
  %v781 = vpop.f32.mrb[0].mxu0
  %v782 = vadd.f32 0.0, %v781
  %v783 = vpop.f32.mrb[0].mxu0
  %784 = vmatprep.mubr.f32.mxu0 0.0
  %785 = vmatmul.mubr.f32.gmra.mrb[0].mxu0 %v691
  %v786 = vpop.f32.mrb[0].mxu0
  %v787 = vadd.f32 0.0, %v786
  %v788 = vpop.f32.mrb[0].mxu0
  %789 = vmatprep.mubr.f32.mxu0 0.0
  %790 = vmatmul.mubr.f32.gmra.mrb[0].mxu0 %v694
  %v791 = vpop.f32.mrb[0].mxu0
  %v792 = vadd.f32 0.0, %v791
  %v793 = vpop.f32.mrb[0].mxu0
  %794 = vmatprep.mubr.f32.mxu0 0.0
  %795 = vmatmul.mubr.f32.gmra.mrb[0].mxu0 %v697
  %v796 = vpop.f32.mrb[0].mxu0
  %v797 = vadd.f32 0.0, %v796
  %v798 = vpop.f32.mrb[0].mxu0
  %799 = vmatprep.mubr.f32.mxu0 0.0
  %800 = vmatmul.mubr.f32.gmra.mrb[0].mxu0 %v700
  %v801 = vpop.f32.mrb[0].mxu0
  %v802 = vadd.f32 0.0, %v801
  %v803 = vpop.f32.mrb[0].mxu0
  %804 = vmatprep.mubr.f32.mxu0 0.0
  %805 = vmatmul.mubr.f32.gmra.mrb[0].mxu0 %v703
  %v806 = vpop.f32.mrb[0].mxu0
  %v807 = vadd.f32 0.0, %v806
  %v808 = vpop.f32.mrb[0].mxu0
  %809 = vdwg.mxu0
  %v810 = vadd.f32 %v672, %v772
  %v811 = vadd.f32 %v673, %v777
  %v812 = vadd.f32 %v674, %v782
  %v813 = vadd.f32 %v675, %v787
  %v814 = vadd.f32 %v676, %v792
  %v815 = vadd.f32 %v677, %v797
  %v816 = vadd.f32 %v678, %v802
  %v817 = vadd.f32 %v679, %v807
  %v818 = vmul.f32 %v810, 0.5
  %v819 = vmul.f32 %v811, 0.5
  %v820 = vmul.f32 %v812, 0.5
  %v821 = vmul.f32 %v813, 0.5
  %v822 = vmul.f32 %v814, 0.5
  %v823 = vmul.f32 %v815, 0.5
  %v824 = vtanh.pop %v818
  %v825 = vtanh.pop %v819
  %v826 = vtanh.pop %v820
  %v827 = vtanh.pop %v821
  %v828 = vtanh.pop %v822
  %v829 = vtanh.pop %v823
  %v830 = vmul.f32 %v824, 0.5
  %v831 = vmul.f32 %v825, 0.5
  %v832 = vmul.f32 %v826, 0.5
  %v833 = vmul.f32 %v827, 0.5
  %v834 = vmul.f32 %v828, 0.5
  %v835 = vmul.f32 %v829, 0.5
  %v836 = vadd.f32 %v830, 0.5
  %v837 = vadd.f32 %v831, 0.5
  %v838 = vadd.f32 %v832, 0.5
  %v839 = vadd.f32 %v833, 0.5
  %v840 = vadd.f32 %v834, 0.5
  %v841 = vadd.f32 %v835, 0.5
  %v842 = vtanh.pop %v816
  %v843 = vtanh.pop %v817
  %v844 = vmul.f32 %v838, 0.0
  %v845 = vmul.f32 %v839, 0.0
  %v846 = vmul.f32 %v836, %v842
  %v847 = vmul.f32 %v837, %v843
  %v848 = vadd.f32 %v844, %v846
  %v849 = vadd.f32 %v845, %v847
  %v850 = vtanh.pop %v848
  %v851 = vtanh.pop %v849
  %v852 = vmul.f32 %v840, %v850
  %v853 = vmul.f32 %v841, %v851
  %s854 = scalar_lea.vmem [#allocation2], 8
  %v855 = vld [vmem:[%s854] sm:$0xff]
  %v856 = vld [vmem:[%s854 + $0x40] sm:$0xff]
  %v857 = vld [vmem:[%s854 + $0x80] sm:$0xff]
  %v858 = vld [vmem:[%s854 + $0xc0] sm:$0xff]
  %v859 = vld [vmem:[%s854 + $0x100] sm:$0xff]
  %v860 = vld [vmem:[%s854 + $0x140] sm:$0xff]
  %v861 = vld [vmem:[%s854 + $0x180] sm:$0xff]
  %v862 = vld [vmem:[%s854 + $0x1c0] sm:$0xff]
  %863 = vmatprep.subr.mxu0 0.0
  %864 = vmatpush1.msra.mxu0 %v852
  %865 = vmatprep.subr.mxu0 0.0
  %866 = vmatpush1.msra.mxu0 %v853
  %867 = vmatprep.subr.mxu0 0.0
  %868 = vmatpush1.msra.mxu0 0.0
  %869 = vmatprep.subr.mxu0 0.0
  %870 = vmatpush1.msra.mxu0 0.0
  %871 = vmatprep.subr.mxu0 0.0
  %872 = vmatpush1.msra.mxu0 0.0
  %873 = vmatprep.subr.mxu0 0.0
  %874 = vmatpush1.msra.mxu0 0.0
  %875 = vmatprep.subr.mxu0 0.0
  %876 = vmatpush1.msra.mxu0 0.0
  %877 = vmatprep.subr.mxu0 0.0
  %878 = vmatpush1.msra.mxu0 0.0
  %879 = vmatprep.subr.mxu0 0.0
  %880 = vmatpush1.msra.mxu0 0.0
  %881 = vmatprep.subr.mxu0 0.0
  %882 = vmatpush1.msra.mxu0 0.0
  %883 = vmatprep.subr.mxu0 0.0
  %884 = vmatpush1.msra.mxu0 0.0
  %885 = vmatprep.subr.mxu0 0.0
  %886 = vmatpush1.msra.mxu0 0.0
  %887 = vmatprep.subr.mxu0 0.0
  %888 = vmatpush1.msra.mxu0 0.0
  %889 = vmatprep.subr.mxu0 0.0
  %890 = vmatpush1.msra.mxu0 0.0
  %891 = vmatprep.subr.mxu0 0.0
  %892 = vmatpush1.msra.mxu0 0.0
  %893 = vmatprep.subr.mxu0 0.0
  %894 = vmatpush1.msra.mxu0 0.0
  %895 = vmatprep.subr.mxu0 0.0
  %896 = vmatpush1.msra.mxu0 0.0
  %897 = vmatprep.subr.mxu0 0.0
  %898 = vmatpush1.msra.mxu0 0.0
  %899 = vmatprep.subr.mxu0 0.0
  %900 = vmatpush1.msra.mxu0 0.0
  %901 = vmatprep.subr.mxu0 0.0
  %902 = vmatpush1.msra.mxu0 0.0
  %903 = vmatprep.subr.mxu0 0.0
  %904 = vmatpush1.msra.mxu0 0.0
  %905 = vmatprep.subr.mxu0 0.0
  %906 = vmatpush1.msra.mxu0 0.0
  %907 = vmatprep.subr.mxu0 0.0
  %908 = vmatpush1.msra.mxu0 0.0
  %909 = vmatprep.subr.mxu0 0.0
  %910 = vmatpush1.msra.mxu0 0.0
  %911 = vmatprep.subr.mxu0 0.0
  %912 = vmatpush1.msra.mxu0 0.0
  %913 = vmatprep.subr.mxu0 0.0
  %914 = vmatpush1.msra.mxu0 0.0
  %915 = vmatprep.subr.mxu0 0.0
  %916 = vmatpush1.msra.mxu0 0.0
  %917 = vmatprep.subr.mxu0 0.0
  %918 = vmatpush1.msra.mxu0 0.0
  %919 = vmatprep.subr.mxu0 0.0
  %920 = vmatpush1.msra.mxu0 0.0
  %921 = vmatprep.subr.mxu0 0.0
  %922 = vmatpush1.msra.mxu0 0.0
  %923 = vmatprep.subr.mxu0 0.0
  %924 = vmatpush1.msra.mxu0 0.0
  %925 = vmatprep.subr.mxu0 0.0
  %926 = vmatpush1.msra.mxu0 0.0
  %927 = vmatprep.mubr.f32.mxu0 0.0
  %928 = vmatmul.mubr.f32.gmra.mrb[0].mxu0 %v682
  %v929 = vpop.f32.mrb[0].mxu0
  %v930 = vadd.f32 0.0, %v929
  %v931 = vpop.f32.mrb[0].mxu0
  %932 = vmatprep.mubr.f32.mxu0 0.0
  %933 = vmatmul.mubr.f32.gmra.mrb[0].mxu0 %v685
  %v934 = vpop.f32.mrb[0].mxu0
  %v935 = vadd.f32 0.0, %v934
  %v936 = vpop.f32.mrb[0].mxu0
  %937 = vmatprep.mubr.f32.mxu0 0.0
  %938 = vmatmul.mubr.f32.gmra.mrb[0].mxu0 %v688
  %v939 = vpop.f32.mrb[0].mxu0
  %v940 = vadd.f32 0.0, %v939
  %v941 = vpop.f32.mrb[0].mxu0
  %942 = vmatprep.mubr.f32.mxu0 0.0
  %943 = vmatmul.mubr.f32.gmra.mrb[0].mxu0 %v691
  %v944 = vpop.f32.mrb[0].mxu0
  %v945 = vadd.f32 0.0, %v944
  %v946 = vpop.f32.mrb[0].mxu0
  %947 = vmatprep.mubr.f32.mxu0 0.0
  %948 = vmatmul.mubr.f32.gmra.mrb[0].mxu0 %v694
  %v949 = vpop.f32.mrb[0].mxu0
  %v950 = vadd.f32 0.0, %v949
  %v951 = vpop.f32.mrb[0].mxu0
  %952 = vmatprep.mubr.f32.mxu0 0.0
  %953 = vmatmul.mubr.f32.gmra.mrb[0].mxu0 %v697
  %v954 = vpop.f32.mrb[0].mxu0
  %v955 = vadd.f32 0.0, %v954
  %v956 = vpop.f32.mrb[0].mxu0
  %957 = vmatprep.mubr.f32.mxu0 0.0
  %958 = vmatmul.mubr.f32.gmra.mrb[0].mxu0 %v700
  %v959 = vpop.f32.mrb[0].mxu0
  %v960 = vadd.f32 0.0, %v959
  %v961 = vpop.f32.mrb[0].mxu0
  %962 = vmatprep.mubr.f32.mxu0 0.0
  %963 = vmatmul.mubr.f32.gmra.mrb[0].mxu0 %v703
  %v964 = vpop.f32.mrb[0].mxu0
  %v965 = vadd.f32 0.0, %v964
  %v966 = vpop.f32.mrb[0].mxu0
  %967 = vdwg.mxu0
  %v968 = vadd.f32 %v855, %v930
  %v969 = vadd.f32 %v856, %v935
  %v970 = vadd.f32 %v857, %v940
  %v971 = vadd.f32 %v858, %v945
  %v972 = vadd.f32 %v859, %v950
  %v973 = vadd.f32 %v860, %v955
  %v974 = vadd.f32 %v861, %v960
  %v975 = vadd.f32 %v862, %v965
  %v976 = vmul.f32 %v968, 0.5
  %v977 = vmul.f32 %v969, 0.5
  %v978 = vmul.f32 %v970, 0.5
  %v979 = vmul.f32 %v971, 0.5
  %v980 = vmul.f32 %v972, 0.5
  %v981 = vmul.f32 %v973, 0.5
  %v982 = vtanh.pop %v976
  %v983 = vtanh.pop %v977
  %v984 = vtanh.pop %v978
  %v985 = vtanh.pop %v979
  %v986 = vtanh.pop %v980
  %v987 = vtanh.pop %v981
  %v988 = vmul.f32 %v982, 0.5
  %v989 = vmul.f32 %v983, 0.5
  %v990 = vmul.f32 %v984, 0.5
  %v991 = vmul.f32 %v985, 0.5
  %v992 = vmul.f32 %v986, 0.5
  %v993 = vmul.f32 %v987, 0.5
  %v994 = vadd.f32 %v988, 0.5
  %v995 = vadd.f32 %v989, 0.5
  %v996 = vadd.f32 %v990, 0.5
  %v997 = vadd.f32 %v991, 0.5
  %v998 = vadd.f32 %v992, 0.5
  %v999 = vadd.f32 %v993, 0.5
  %v1000 = vtanh.pop %v974
  %v1001 = vtanh.pop %v975
  %v1002 = vmul.f32 %v996, %v848
  %v1003 = vmul.f32 %v997, %v849
  %v1004 = vmul.f32 %v994, %v1000
  %v1005 = vmul.f32 %v995, %v1001
  %v1006 = vadd.f32 %v1002, %v1004
  %v1007 = vadd.f32 %v1003, %v1005
  %v1008 = vtanh.pop %v1006
  %v1009 = vtanh.pop %v1007
  %v1010 = vmul.f32 %v998, %v1008
  %v1011 = vmul.f32 %v999, %v1009
  %s1012 = scalar_lea.vmem [#allocation2], 16
  %v1013 = vld [vmem:[%s1012] sm:$0xff]
  %v1014 = vld [vmem:[%s1012 + $0x40] sm:$0xff]
  %v1015 = vld [vmem:[%s1012 + $0x80] sm:$0xff]
  %v1016 = vld [vmem:[%s1012 + $0xc0] sm:$0xff]
  %v1017 = vld [vmem:[%s1012 + $0x100] sm:$0xff]
  %v1018 = vld [vmem:[%s1012 + $0x140] sm:$0xff]
  %v1019 = vld [vmem:[%s1012 + $0x180] sm:$0xff]
  %v1020 = vld [vmem:[%s1012 + $0x1c0] sm:$0xff]
  %1021 = vmatprep.subr.mxu0 0.0
  %1022 = vmatpush1.msra.mxu0 %v1010
  %1023 = vmatprep.subr.mxu0 0.0
  %1024 = vmatpush1.msra.mxu0 %v1011
  %1025 = vmatprep.subr.mxu0 0.0
  %1026 = vmatpush1.msra.mxu0 0.0
  %1027 = vmatprep.subr.mxu0 0.0
  %1028 = vmatpush1.msra.mxu0 0.0
  %1029 = vmatprep.subr.mxu0 0.0
  %1030 = vmatpush1.msra.mxu0 0.0
  %1031 = vmatprep.subr.mxu0 0.0
  %1032 = vmatpush1.msra.mxu0 0.0
  %1033 = vmatprep.subr.mxu0 0.0
  %1034 = vmatpush1.msra.mxu0 0.0
  %1035 = vmatprep.subr.mxu0 0.0
  %1036 = vmatpush1.msra.mxu0 0.0
  %1037 = vmatprep.subr.mxu0 0.0
  %1038 = vmatpush1.msra.mxu0 0.0
  %1039 = vmatprep.subr.mxu0 0.0
  %1040 = vmatpush1.msra.mxu0 0.0
  %1041 = vmatprep.subr.mxu0 0.0
  %1042 = vmatpush1.msra.mxu0 0.0
  %1043 = vmatprep.subr.mxu0 0.0
  %1044 = vmatpush1.msra.mxu0 0.0
  %1045 = vmatprep.subr.mxu0 0.0
  %1046 = vmatpush1.msra.mxu0 0.0
  %1047 = vmatprep.subr.mxu0 0.0
  %1048 = vmatpush1.msra.mxu0 0.0
  %1049 = vmatprep.subr.mxu0 0.0
  %1050 = vmatpush1.msra.mxu0 0.0
  %1051 = vmatprep.subr.mxu0 0.0
  %1052 = vmatpush1.msra.mxu0 0.0
  %1053 = vmatprep.subr.mxu0 0.0
  %1054 = vmatpush1.msra.mxu0 0.0
  %1055 = vmatprep.subr.mxu0 0.0
  %1056 = vmatpush1.msra.mxu0 0.0
  %1057 = vmatprep.subr.mxu0 0.0
  %1058 = vmatpush1.msra.mxu0 0.0
  %1059 = vmatprep.subr.mxu0 0.0
  %1060 = vmatpush1.msra.mxu0 0.0
  %1061 = vmatprep.subr.mxu0 0.0
  %1062 = vmatpush1.msra.mxu0 0.0
  %1063 = vmatprep.subr.mxu0 0.0
  %1064 = vmatpush1.msra.mxu0 0.0
  %1065 = vmatprep.subr.mxu0 0.0
  %1066 = vmatpush1.msra.mxu0 0.0
  %1067 = vmatprep.subr.mxu0 0.0
  %1068 = vmatpush1.msra.mxu0 0.0
  %1069 = vmatprep.subr.mxu0 0.0
  %1070 = vmatpush1.msra.mxu0 0.0
  %1071 = vmatprep.subr.mxu0 0.0
  %1072 = vmatpush1.msra.mxu0 0.0
  %1073 = vmatprep.subr.mxu0 0.0
  %1074 = vmatpush1.msra.mxu0 0.0
  %1075 = vmatprep.subr.mxu0 0.0
  %1076 = vmatpush1.msra.mxu0 0.0
  %1077 = vmatprep.subr.mxu0 0.0
  %1078 = vmatpush1.msra.mxu0 0.0
  %1079 = vmatprep.subr.mxu0 0.0
  %1080 = vmatpush1.msra.mxu0 0.0
  %1081 = vmatprep.subr.mxu0 0.0
  %1082 = vmatpush1.msra.mxu0 0.0
  %1083 = vmatprep.subr.mxu0 0.0
  %1084 = vmatpush1.msra.mxu0 0.0
  %1085 = vmatprep.mubr.f32.mxu0 0.0
  %1086 = vmatmul.mubr.f32.gmra.mrb[0].mxu0 %v682
  %v1087 = vpop.f32.mrb[0].mxu0
  %v1088 = vadd.f32 0.0, %v1087
  %v1089 = vpop.f32.mrb[0].mxu0
  %1090 = vmatprep.mubr.f32.mxu0 0.0
  %1091 = vmatmul.mubr.f32.gmra.mrb[0].mxu0 %v685
  %v1092 = vpop.f32.mrb[0].mxu0
  %v1093 = vadd.f32 0.0, %v1092
  %v1094 = vpop.f32.mrb[0].mxu0
  %1095 = vmatprep.mubr.f32.mxu0 0.0
  %1096 = vmatmul.mubr.f32.gmra.mrb[0].mxu0 %v688
  %v1097 = vpop.f32.mrb[0].mxu0
  %v1098 = vadd.f32 0.0, %v1097
  %v1099 = vpop.f32.mrb[0].mxu0
  %1100 = vmatprep.mubr.f32.mxu0 0.0
  %1101 = vmatmul.mubr.f32.gmra.mrb[0].mxu0 %v691
  %v1102 = vpop.f32.mrb[0].mxu0
  %v1103 = vadd.f32 0.0, %v1102
  %v1104 = vpop.f32.mrb[0].mxu0
  %1105 = vmatprep.mubr.f32.mxu0 0.0
  %1106 = vmatmul.mubr.f32.gmra.mrb[0].mxu0 %v694
  %v1107 = vpop.f32.mrb[0].mxu0
  %v1108 = vadd.f32 0.0, %v1107
  %v1109 = vpop.f32.mrb[0].mxu0
  %1110 = vmatprep.mubr.f32.mxu0 0.0
  %1111 = vmatmul.mubr.f32.gmra.mrb[0].mxu0 %v697
  %v1112 = vpop.f32.mrb[0].mxu0
  %v1113 = vadd.f32 0.0, %v1112
  %v1114 = vpop.f32.mrb[0].mxu0
  %1115 = vmatprep.mubr.f32.mxu0 0.0
  %1116 = vmatmul.mubr.f32.gmra.mrb[0].mxu0 %v700
  %v1117 = vpop.f32.mrb[0].mxu0
  %v1118 = vadd.f32 0.0, %v1117
  %v1119 = vpop.f32.mrb[0].mxu0
  %1120 = vmatprep.mubr.f32.mxu0 0.0
  %1121 = vmatmul.mubr.f32.gmra.mrb[0].mxu0 %v703
  %v1122 = vpop.f32.mrb[0].mxu0
  %v1123 = vadd.f32 0.0, %v1122
  %v1124 = vpop.f32.mrb[0].mxu0
  %1125 = vdwg.mxu0
  %v1126 = vadd.f32 %v1013, %v1088
  %v1127 = vadd.f32 %v1014, %v1093
  %v1128 = vadd.f32 %v1015, %v1098
  %v1129 = vadd.f32 %v1016, %v1103
  %v1130 = vadd.f32 %v1017, %v1108
  %v1131 = vadd.f32 %v1018, %v1113
  %v1132 = vadd.f32 %v1019, %v1118
  %v1133 = vadd.f32 %v1020, %v1123
  %v1134 = vmul.f32 %v1126, 0.5
  %v1135 = vmul.f32 %v1127, 0.5
  %v1136 = vmul.f32 %v1128, 0.5
  %v1137 = vmul.f32 %v1129, 0.5
  %v1138 = vmul.f32 %v1130, 0.5
  %v1139 = vmul.f32 %v1131, 0.5
  %v1140 = vtanh.pop %v1134
  %v1141 = vtanh.pop %v1135
  %v1142 = vtanh.pop %v1136
  %v1143 = vtanh.pop %v1137
  %v1144 = vtanh.pop %v1138
  %v1145 = vtanh.pop %v1139
  %v1146 = vmul.f32 %v1140, 0.5
  %v1147 = vmul.f32 %v1141, 0.5
  %v1148 = vmul.f32 %v1142, 0.5
  %v1149 = vmul.f32 %v1143, 0.5
  %v1150 = vmul.f32 %v1144, 0.5
  %v1151 = vmul.f32 %v1145, 0.5
  %v1152 = vadd.f32 %v1146, 0.5
  %v1153 = vadd.f32 %v1147, 0.5
  %v1154 = vadd.f32 %v1148, 0.5
  %v1155 = vadd.f32 %v1149, 0.5
  %v1156 = vadd.f32 %v1150, 0.5
  %v1157 = vadd.f32 %v1151, 0.5
  %v1158 = vtanh.pop %v1132
  %v1159 = vtanh.pop %v1133
  %v1160 = vmul.f32 %v1154, %v1006
  %v1161 = vmul.f32 %v1155, %v1007
  %v1162 = vmul.f32 %v1152, %v1158
  %v1163 = vmul.f32 %v1153, %v1159
  %v1164 = vadd.f32 %v1160, %v1162
  %v1165 = vadd.f32 %v1161, %v1163
  %v1166 = vtanh.pop %v1164
  %v1167 = vtanh.pop %v1165
  %v1168 = vmul.f32 %v1156, %v1166
  %v1169 = vmul.f32 %v1157, %v1167
  %s1170 = scalar_lea.vmem [#allocation2], 24
  %v1171 = vld [vmem:[%s1170] sm:$0xff]
  %v1172 = vld [vmem:[%s1170 + $0x40] sm:$0xff]
  %v1173 = vld [vmem:[%s1170 + $0x80] sm:$0xff]
  %v1174 = vld [vmem:[%s1170 + $0xc0] sm:$0xff]
  %v1175 = vld [vmem:[%s1170 + $0x100] sm:$0xff]
  %v1176 = vld [vmem:[%s1170 + $0x140] sm:$0xff]
  %v1177 = vld [vmem:[%s1170 + $0x180] sm:$0xff]
  %v1178 = vld [vmem:[%s1170 + $0x1c0] sm:$0xff]
  %1179 = vmatprep.subr.mxu0 0.0
  %1180 = vmatpush1.msra.mxu0 %v1168
  %1181 = vmatprep.subr.mxu0 0.0
  %1182 = vmatpush1.msra.mxu0 %v1169
  %1183 = vmatprep.subr.mxu0 0.0
  %1184 = vmatpush1.msra.mxu0 0.0
  %1185 = vmatprep.subr.mxu0 0.0
  %1186 = vmatpush1.msra.mxu0 0.0
  %1187 = vmatprep.subr.mxu0 0.0
  %1188 = vmatpush1.msra.mxu0 0.0
  %1189 = vmatprep.subr.mxu0 0.0
  %1190 = vmatpush1.msra.mxu0 0.0
  %1191 = vmatprep.subr.mxu0 0.0
  %1192 = vmatpush1.msra.mxu0 0.0
  %1193 = vmatprep.subr.mxu0 0.0
  %1194 = vmatpush1.msra.mxu0 0.0
  %1195 = vmatprep.subr.mxu0 0.0
  %1196 = vmatpush1.msra.mxu0 0.0
  %1197 = vmatprep.subr.mxu0 0.0
  %1198 = vmatpush1.msra.mxu0 0.0
  %1199 = vmatprep.subr.mxu0 0.0
  %1200 = vmatpush1.msra.mxu0 0.0
  %1201 = vmatprep.subr.mxu0 0.0
  %1202 = vmatpush1.msra.mxu0 0.0
  %1203 = vmatprep.subr.mxu0 0.0
  %1204 = vmatpush1.msra.mxu0 0.0
  %1205 = vmatprep.subr.mxu0 0.0
  %1206 = vmatpush1.msra.mxu0 0.0
  %1207 = vmatprep.subr.mxu0 0.0
  %1208 = vmatpush1.msra.mxu0 0.0
  %1209 = vmatprep.subr.mxu0 0.0
  %1210 = vmatpush1.msra.mxu0 0.0
  %1211 = vmatprep.subr.mxu0 0.0
  %1212 = vmatpush1.msra.mxu0 0.0
  %1213 = vmatprep.subr.mxu0 0.0
  %1214 = vmatpush1.msra.mxu0 0.0
  %1215 = vmatprep.subr.mxu0 0.0
  %1216 = vmatpush1.msra.mxu0 0.0
  %1217 = vmatprep.subr.mxu0 0.0
  %1218 = vmatpush1.msra.mxu0 0.0
  %1219 = vmatprep.subr.mxu0 0.0
  %1220 = vmatpush1.msra.mxu0 0.0
  %1221 = vmatprep.subr.mxu0 0.0
  %1222 = vmatpush1.msra.mxu0 0.0
  %1223 = vmatprep.subr.mxu0 0.0
  %1224 = vmatpush1.msra.mxu0 0.0
  %1225 = vmatprep.subr.mxu0 0.0
  %1226 = vmatpush1.msra.mxu0 0.0
  %1227 = vmatprep.subr.mxu0 0.0
  %1228 = vmatpush1.msra.mxu0 0.0
  %1229 = vmatprep.subr.mxu0 0.0
  %1230 = vmatpush1.msra.mxu0 0.0
  %1231 = vmatprep.subr.mxu0 0.0
  %1232 = vmatpush1.msra.mxu0 0.0
  %1233 = vmatprep.subr.mxu0 0.0
  %1234 = vmatpush1.msra.mxu0 0.0
  %1235 = vmatprep.subr.mxu0 0.0
  %1236 = vmatpush1.msra.mxu0 0.0
  %1237 = vmatprep.subr.mxu0 0.0
  %1238 = vmatpush1.msra.mxu0 0.0
  %1239 = vmatprep.subr.mxu0 0.0
  %1240 = vmatpush1.msra.mxu0 0.0
  %1241 = vmatprep.subr.mxu0 0.0
  %1242 = vmatpush1.msra.mxu0 0.0
  %1243 = vmatprep.mubr.f32.mxu0 0.0
  %1244 = vmatmul.mubr.f32.gmra.mrb[0].mxu0 %v682
  %v1245 = vpop.f32.mrb[0].mxu0
  %v1246 = vadd.f32 0.0, %v1245
  %v1247 = vpop.f32.mrb[0].mxu0
  %1248 = vmatprep.mubr.f32.mxu0 0.0
  %1249 = vmatmul.mubr.f32.gmra.mrb[0].mxu0 %v685
  %v1250 = vpop.f32.mrb[0].mxu0
  %v1251 = vadd.f32 0.0, %v1250
  %v1252 = vpop.f32.mrb[0].mxu0
  %1253 = vmatprep.mubr.f32.mxu0 0.0
  %1254 = vmatmul.mubr.f32.gmra.mrb[0].mxu0 %v688
  %v1255 = vpop.f32.mrb[0].mxu0
  %v1256 = vadd.f32 0.0, %v1255
  %v1257 = vpop.f32.mrb[0].mxu0
  %1258 = vmatprep.mubr.f32.mxu0 0.0
  %1259 = vmatmul.mubr.f32.gmra.mrb[0].mxu0 %v691
  %v1260 = vpop.f32.mrb[0].mxu0
  %v1261 = vadd.f32 0.0, %v1260
  %v1262 = vpop.f32.mrb[0].mxu0
  %1263 = vmatprep.mubr.f32.mxu0 0.0
  %1264 = vmatmul.mubr.f32.gmra.mrb[0].mxu0 %v694
  %v1265 = vpop.f32.mrb[0].mxu0
  %v1266 = vadd.f32 0.0, %v1265
  %v1267 = vpop.f32.mrb[0].mxu0
  %1268 = vmatprep.mubr.f32.mxu0 0.0
  %1269 = vmatmul.mubr.f32.gmra.mrb[0].mxu0 %v697
  %v1270 = vpop.f32.mrb[0].mxu0
  %v1271 = vadd.f32 0.0, %v1270
  %v1272 = vpop.f32.mrb[0].mxu0
  %1273 = vmatprep.mubr.f32.mxu0 0.0
  %1274 = vmatmul.mubr.f32.gmra.mrb[0].mxu0 %v700
  %v1275 = vpop.f32.mrb[0].mxu0
  %v1276 = vadd.f32 0.0, %v1275
  %v1277 = vpop.f32.mrb[0].mxu0
  %1278 = vmatprep.mubr.f32.mxu0 0.0
  %1279 = vmatmul.mubr.f32.gmra.mrb[0].mxu0 %v703
  %v1280 = vpop.f32.mrb[0].mxu0
  %v1281 = vadd.f32 0.0, %v1280
  %v1282 = vpop.f32.mrb[0].mxu0
  %1283 = vdwg.mxu0
  %v1284 = vadd.f32 %v1171, %v1246
  %v1285 = vadd.f32 %v1172, %v1251
  %v1286 = vadd.f32 %v1173, %v1256
  %v1287 = vadd.f32 %v1174, %v1261
  %v1288 = vadd.f32 %v1175, %v1266
  %v1289 = vadd.f32 %v1176, %v1271
  %v1290 = vadd.f32 %v1177, %v1276
  %v1291 = vadd.f32 %v1178, %v1281
  %v1292 = vmul.f32 %v1284, 0.5
  %v1293 = vmul.f32 %v1285, 0.5
  %v1294 = vmul.f32 %v1286, 0.5
  %v1295 = vmul.f32 %v1287, 0.5
  %v1296 = vmul.f32 %v1288, 0.5
  %v1297 = vmul.f32 %v1289, 0.5
  %v1298 = vtanh.pop %v1292
  %v1299 = vtanh.pop %v1293
  %v1300 = vtanh.pop %v1294
  %v1301 = vtanh.pop %v1295
  %v1302 = vtanh.pop %v1296
  %v1303 = vtanh.pop %v1297
  %v1304 = vmul.f32 %v1298, 0.5
  %v1305 = vmul.f32 %v1299, 0.5
  %v1306 = vmul.f32 %v1300, 0.5
  %v1307 = vmul.f32 %v1301, 0.5
  %v1308 = vmul.f32 %v1302, 0.5
  %v1309 = vmul.f32 %v1303, 0.5
  %v1310 = vadd.f32 %v1304, 0.5
  %v1311 = vadd.f32 %v1305, 0.5
  %v1312 = vadd.f32 %v1306, 0.5
  %v1313 = vadd.f32 %v1307, 0.5
  %v1314 = vadd.f32 %v1308, 0.5
  %v1315 = vadd.f32 %v1309, 0.5
  %v1316 = vtanh.pop %v1290
  %v1317 = vtanh.pop %v1291
  %v1318 = vmul.f32 %v1312, %v1164
  %v1319 = vmul.f32 %v1313, %v1165
  %v1320 = vmul.f32 %v1310, %v1316
  %v1321 = vmul.f32 %v1311, %v1317
  %v1322 = vadd.f32 %v1318, %v1320
  %v1323 = vadd.f32 %v1319, %v1321
  %v1324 = vtanh.pop %v1322
  %v1325 = vtanh.pop %v1323
  %v1326 = vmul.f32 %v1314, %v1324
  %v1327 = vmul.f32 %v1315, %v1325
  %s1328 = scalar_lea.vmem [#allocation2], 32
  %v1329 = vld [vmem:[%s1328] sm:$0xff]
  %v1330 = vld [vmem:[%s1328 + $0x40] sm:$0xff]
  %v1331 = vld [vmem:[%s1328 + $0x80] sm:$0xff]
  %v1332 = vld [vmem:[%s1328 + $0xc0] sm:$0xff]
  %v1333 = vld [vmem:[%s1328 + $0x100] sm:$0xff]
  %v1334 = vld [vmem:[%s1328 + $0x140] sm:$0xff]
  %v1335 = vld [vmem:[%s1328 + $0x180] sm:$0xff]
  %v1336 = vld [vmem:[%s1328 + $0x1c0] sm:$0xff]
  %1337 = vmatprep.subr.mxu0 0.0
  %1338 = vmatpush1.msra.mxu0 %v1326
  %1339 = vmatprep.subr.mxu0 0.0
  %1340 = vmatpush1.msra.mxu0 %v1327
  %1341 = vmatprep.subr.mxu0 0.0
  %1342 = vmatpush1.msra.mxu0 0.0
  %1343 = vmatprep.subr.mxu0 0.0
  %1344 = vmatpush1.msra.mxu0 0.0
  %1345 = vmatprep.subr.mxu0 0.0
  %1346 = vmatpush1.msra.mxu0 0.0
  %1347 = vmatprep.subr.mxu0 0.0
  %1348 = vmatpush1.msra.mxu0 0.0
  %1349 = vmatprep.subr.mxu0 0.0
  %1350 = vmatpush1.msra.mxu0 0.0
  %1351 = vmatprep.subr.mxu0 0.0
  %1352 = vmatpush1.msra.mxu0 0.0
  %1353 = vmatprep.subr.mxu0 0.0
  %1354 = vmatpush1.msra.mxu0 0.0
  %1355 = vmatprep.subr.mxu0 0.0
  %1356 = vmatpush1.msra.mxu0 0.0
  %1357 = vmatprep.subr.mxu0 0.0
  %1358 = vmatpush1.msra.mxu0 0.0
  %1359 = vmatprep.subr.mxu0 0.0
  %1360 = vmatpush1.msra.mxu0 0.0
  %1361 = vmatprep.subr.mxu0 0.0
  %1362 = vmatpush1.msra.mxu0 0.0
  %1363 = vmatprep.subr.mxu0 0.0
  %1364 = vmatpush1.msra.mxu0 0.0
  %1365 = vmatprep.subr.mxu0 0.0
  %1366 = vmatpush1.msra.mxu0 0.0
  %1367 = vmatprep.subr.mxu0 0.0
  %1368 = vmatpush1.msra.mxu0 0.0
  %1369 = vmatprep.subr.mxu0 0.0
  %1370 = vmatpush1.msra.mxu0 0.0
  %1371 = vmatprep.subr.mxu0 0.0
  %1372 = vmatpush1.msra.mxu0 0.0
  %1373 = vmatprep.subr.mxu0 0.0
  %1374 = vmatpush1.msra.mxu0 0.0
  %1375 = vmatprep.subr.mxu0 0.0
  %1376 = vmatpush1.msra.mxu0 0.0
  %1377 = vmatprep.subr.mxu0 0.0
  %1378 = vmatpush1.msra.mxu0 0.0
  %1379 = vmatprep.subr.mxu0 0.0
  %1380 = vmatpush1.msra.mxu0 0.0
  %1381 = vmatprep.subr.mxu0 0.0
  %1382 = vmatpush1.msra.mxu0 0.0
  %1383 = vmatprep.subr.mxu0 0.0
  %1384 = vmatpush1.msra.mxu0 0.0
  %1385 = vmatprep.subr.mxu0 0.0
  %1386 = vmatpush1.msra.mxu0 0.0
  %1387 = vmatprep.subr.mxu0 0.0
  %1388 = vmatpush1.msra.mxu0 0.0
  %1389 = vmatprep.subr.mxu0 0.0
  %1390 = vmatpush1.msra.mxu0 0.0
  %1391 = vmatprep.subr.mxu0 0.0
  %1392 = vmatpush1.msra.mxu0 0.0
  %1393 = vmatprep.subr.mxu0 0.0
  %1394 = vmatpush1.msra.mxu0 0.0
  %1395 = vmatprep.subr.mxu0 0.0
  %1396 = vmatpush1.msra.mxu0 0.0
  %1397 = vmatprep.subr.mxu0 0.0
  %1398 = vmatpush1.msra.mxu0 0.0
  %1399 = vmatprep.subr.mxu0 0.0
  %1400 = vmatpush1.msra.mxu0 0.0
  %1401 = vmatprep.mubr.f32.mxu0 0.0
  %1402 = vmatmul.mubr.f32.gmra.mrb[0].mxu0 %v682
  %v1403 = vpop.f32.mrb[0].mxu0
  %v1404 = vadd.f32 0.0, %v1403
  %v1405 = vpop.f32.mrb[0].mxu0
  %1406 = vmatprep.mubr.f32.mxu0 0.0
  %1407 = vmatmul.mubr.f32.gmra.mrb[0].mxu0 %v685
  %v1408 = vpop.f32.mrb[0].mxu0
  %v1409 = vadd.f32 0.0, %v1408
  %v1410 = vpop.f32.mrb[0].mxu0
  %1411 = vmatprep.mubr.f32.mxu0 0.0
  %1412 = vmatmul.mubr.f32.gmra.mrb[0].mxu0 %v688
  %v1413 = vpop.f32.mrb[0].mxu0
  %v1414 = vadd.f32 0.0, %v1413
  %v1415 = vpop.f32.mrb[0].mxu0
  %1416 = vmatprep.mubr.f32.mxu0 0.0
  %1417 = vmatmul.mubr.f32.gmra.mrb[0].mxu0 %v691
  %v1418 = vpop.f32.mrb[0].mxu0
  %v1419 = vadd.f32 0.0, %v1418
  %v1420 = vpop.f32.mrb[0].mxu0
  %1421 = vmatprep.mubr.f32.mxu0 0.0
  %1422 = vmatmul.mubr.f32.gmra.mrb[0].mxu0 %v694
  %v1423 = vpop.f32.mrb[0].mxu0
  %v1424 = vadd.f32 0.0, %v1423
  %v1425 = vpop.f32.mrb[0].mxu0
  %1426 = vmatprep.mubr.f32.mxu0 0.0
  %1427 = vmatmul.mubr.f32.gmra.mrb[0].mxu0 %v697
  %v1428 = vpop.f32.mrb[0].mxu0
  %v1429 = vadd.f32 0.0, %v1428
  %v1430 = vpop.f32.mrb[0].mxu0
  %1431 = vmatprep.mubr.f32.mxu0 0.0
  %1432 = vmatmul.mubr.f32.gmra.mrb[0].mxu0 %v700
  %v1433 = vpop.f32.mrb[0].mxu0
  %v1434 = vadd.f32 0.0, %v1433
  %v1435 = vpop.f32.mrb[0].mxu0
  %1436 = vmatprep.mubr.f32.mxu0 0.0
  %1437 = vmatmul.mubr.f32.gmra.mrb[0].mxu0 %v703
  %v1438 = vpop.f32.mrb[0].mxu0
  %v1439 = vadd.f32 0.0, %v1438
  %v1440 = vpop.f32.mrb[0].mxu0
  %1441 = vdwg.mxu0
  %v1442 = vadd.f32 %v1329, %v1404
  %v1443 = vadd.f32 %v1330, %v1409
  %v1444 = vadd.f32 %v1331, %v1414
  %v1445 = vadd.f32 %v1332, %v1419
  %v1446 = vadd.f32 %v1333, %v1424
  %v1447 = vadd.f32 %v1334, %v1429
  %v1448 = vadd.f32 %v1335, %v1434
  %v1449 = vadd.f32 %v1336, %v1439
  %v1450 = vmul.f32 %v1442, 0.5
  %v1451 = vmul.f32 %v1443, 0.5
  %v1452 = vmul.f32 %v1444, 0.5
  %v1453 = vmul.f32 %v1445, 0.5
  %v1454 = vmul.f32 %v1446, 0.5
  %v1455 = vmul.f32 %v1447, 0.5
  %v1456 = vtanh.pop %v1450
  %v1457 = vtanh.pop %v1451
  %v1458 = vtanh.pop %v1452
  %v1459 = vtanh.pop %v1453
  %v1460 = vtanh.pop %v1454
  %v1461 = vtanh.pop %v1455
  %v1462 = vmul.f32 %v1456, 0.5
  %v1463 = vmul.f32 %v1457, 0.5
  %v1464 = vmul.f32 %v1458, 0.5
  %v1465 = vmul.f32 %v1459, 0.5
  %v1466 = vmul.f32 %v1460, 0.5
  %v1467 = vmul.f32 %v1461, 0.5
  %v1468 = vadd.f32 %v1462, 0.5
  %v1469 = vadd.f32 %v1463, 0.5
  %v1470 = vadd.f32 %v1464, 0.5
  %v1471 = vadd.f32 %v1465, 0.5
  %v1472 = vadd.f32 %v1466, 0.5
  %v1473 = vadd.f32 %v1467, 0.5
  %v1474 = vtanh.pop %v1448
  %v1475 = vtanh.pop %v1449
  %v1476 = vmul.f32 %v1470, %v1322
  %v1477 = vmul.f32 %v1471, %v1323
  %v1478 = vmul.f32 %v1468, %v1474
  %v1479 = vmul.f32 %v1469, %v1475
  %v1480 = vadd.f32 %v1476, %v1478
  %v1481 = vadd.f32 %v1477, %v1479
  %v1482 = vtanh.pop %v1480
  %v1483 = vtanh.pop %v1481
  %v1484 = vmul.f32 %v1472, %v1482
  %v1485 = vmul.f32 %v1473, %v1483
  %s1486 = scalar_lea.vmem [#allocation2], 40
  %v1487 = vld [vmem:[%s1486] sm:$0xff]
  %v1488 = vld [vmem:[%s1486 + $0x40] sm:$0xff]
  %v1489 = vld [vmem:[%s1486 + $0x80] sm:$0xff]
  %v1490 = vld [vmem:[%s1486 + $0xc0] sm:$0xff]
  %v1491 = vld [vmem:[%s1486 + $0x100] sm:$0xff]
  %v1492 = vld [vmem:[%s1486 + $0x140] sm:$0xff]
  %v1493 = vld [vmem:[%s1486 + $0x180] sm:$0xff]
  %v1494 = vld [vmem:[%s1486 + $0x1c0] sm:$0xff]
  %1495 = vmatprep.subr.mxu0 0.0
  %1496 = vmatpush1.msra.mxu0 %v1484
  %1497 = vmatprep.subr.mxu0 0.0
  %1498 = vmatpush1.msra.mxu0 %v1485
  %1499 = vmatprep.subr.mxu0 0.0
  %1500 = vmatpush1.msra.mxu0 0.0
  %1501 = vmatprep.subr.mxu0 0.0
  %1502 = vmatpush1.msra.mxu0 0.0
  %1503 = vmatprep.subr.mxu0 0.0
  %1504 = vmatpush1.msra.mxu0 0.0
  %1505 = vmatprep.subr.mxu0 0.0
  %1506 = vmatpush1.msra.mxu0 0.0
  %1507 = vmatprep.subr.mxu0 0.0
  %1508 = vmatpush1.msra.mxu0 0.0
  %1509 = vmatprep.subr.mxu0 0.0
  %1510 = vmatpush1.msra.mxu0 0.0
  %1511 = vmatprep.subr.mxu0 0.0
  %1512 = vmatpush1.msra.mxu0 0.0
  %1513 = vmatprep.subr.mxu0 0.0
  %1514 = vmatpush1.msra.mxu0 0.0
  %1515 = vmatprep.subr.mxu0 0.0
  %1516 = vmatpush1.msra.mxu0 0.0
  %1517 = vmatprep.subr.mxu0 0.0
  %1518 = vmatpush1.msra.mxu0 0.0
  %1519 = vmatprep.subr.mxu0 0.0
  %1520 = vmatpush1.msra.mxu0 0.0
  %1521 = vmatprep.subr.mxu0 0.0
  %1522 = vmatpush1.msra.mxu0 0.0
  %1523 = vmatprep.subr.mxu0 0.0
  %1524 = vmatpush1.msra.mxu0 0.0
  %1525 = vmatprep.subr.mxu0 0.0
  %1526 = vmatpush1.msra.mxu0 0.0
  %1527 = vmatprep.subr.mxu0 0.0
  %1528 = vmatpush1.msra.mxu0 0.0
  %1529 = vmatprep.subr.mxu0 0.0
  %1530 = vmatpush1.msra.mxu0 0.0
  %1531 = vmatprep.subr.mxu0 0.0
  %1532 = vmatpush1.msra.mxu0 0.0
  %1533 = vmatprep.subr.mxu0 0.0
  %1534 = vmatpush1.msra.mxu0 0.0
  %1535 = vmatprep.subr.mxu0 0.0
  %1536 = vmatpush1.msra.mxu0 0.0
  %1537 = vmatprep.subr.mxu0 0.0
  %1538 = vmatpush1.msra.mxu0 0.0
  %1539 = vmatprep.subr.mxu0 0.0
  %1540 = vmatpush1.msra.mxu0 0.0
  %1541 = vmatprep.subr.mxu0 0.0
  %1542 = vmatpush1.msra.mxu0 0.0
  %1543 = vmatprep.subr.mxu0 0.0
  %1544 = vmatpush1.msra.mxu0 0.0
  %1545 = vmatprep.subr.mxu0 0.0
  %1546 = vmatpush1.msra.mxu0 0.0
  %1547 = vmatprep.subr.mxu0 0.0
  %1548 = vmatpush1.msra.mxu0 0.0
  %1549 = vmatprep.subr.mxu0 0.0
  %1550 = vmatpush1.msra.mxu0 0.0
  %1551 = vmatprep.subr.mxu0 0.0
  %1552 = vmatpush1.msra.mxu0 0.0
  %1553 = vmatprep.subr.mxu0 0.0
  %1554 = vmatpush1.msra.mxu0 0.0
  %1555 = vmatprep.subr.mxu0 0.0
  %1556 = vmatpush1.msra.mxu0 0.0
  %1557 = vmatprep.subr.mxu0 0.0
  %1558 = vmatpush1.msra.mxu0 0.0
  %1559 = vmatprep.mubr.f32.mxu0 0.0
  %1560 = vmatmul.mubr.f32.gmra.mrb[0].mxu0 %v682
  %v1561 = vpop.f32.mrb[0].mxu0
  %v1562 = vadd.f32 0.0, %v1561
  %v1563 = vpop.f32.mrb[0].mxu0
  %1564 = vmatprep.mubr.f32.mxu0 0.0
  %1565 = vmatmul.mubr.f32.gmra.mrb[0].mxu0 %v685
  %v1566 = vpop.f32.mrb[0].mxu0
  %v1567 = vadd.f32 0.0, %v1566
  %v1568 = vpop.f32.mrb[0].mxu0
  %1569 = vmatprep.mubr.f32.mxu0 0.0
  %1570 = vmatmul.mubr.f32.gmra.mrb[0].mxu0 %v688
  %v1571 = vpop.f32.mrb[0].mxu0
  %v1572 = vadd.f32 0.0, %v1571
  %v1573 = vpop.f32.mrb[0].mxu0
  %1574 = vmatprep.mubr.f32.mxu0 0.0
  %1575 = vmatmul.mubr.f32.gmra.mrb[0].mxu0 %v691
  %v1576 = vpop.f32.mrb[0].mxu0
  %v1577 = vadd.f32 0.0, %v1576
  %v1578 = vpop.f32.mrb[0].mxu0
  %1579 = vmatprep.mubr.f32.mxu0 0.0
  %1580 = vmatmul.mubr.f32.gmra.mrb[0].mxu0 %v694
  %v1581 = vpop.f32.mrb[0].mxu0
  %v1582 = vadd.f32 0.0, %v1581
  %v1583 = vpop.f32.mrb[0].mxu0
  %1584 = vmatprep.mubr.f32.mxu0 0.0
  %1585 = vmatmul.mubr.f32.gmra.mrb[0].mxu0 %v697
  %v1586 = vpop.f32.mrb[0].mxu0
  %v1587 = vadd.f32 0.0, %v1586
  %v1588 = vpop.f32.mrb[0].mxu0
  %1589 = vmatprep.mubr.f32.mxu0 0.0
  %1590 = vmatmul.mubr.f32.gmra.mrb[0].mxu0 %v700
  %v1591 = vpop.f32.mrb[0].mxu0
  %v1592 = vadd.f32 0.0, %v1591
  %v1593 = vpop.f32.mrb[0].mxu0
  %1594 = vmatprep.mubr.f32.mxu0 0.0
  %1595 = vmatmul.mubr.f32.gmra.mrb[0].mxu0 %v703
  %v1596 = vpop.f32.mrb[0].mxu0
  %v1597 = vadd.f32 0.0, %v1596
  %v1598 = vpop.f32.mrb[0].mxu0
  %1599 = vdwg.mxu0
  %v1600 = vadd.f32 %v1487, %v1562
  %v1601 = vadd.f32 %v1488, %v1567
  %v1602 = vadd.f32 %v1489, %v1572
  %v1603 = vadd.f32 %v1490, %v1577
  %v1604 = vadd.f32 %v1491, %v1582
  %v1605 = vadd.f32 %v1492, %v1587
  %v1606 = vadd.f32 %v1493, %v1592
  %v1607 = vadd.f32 %v1494, %v1597
  %v1608 = vmul.f32 %v1600, 0.5
  %v1609 = vmul.f32 %v1601, 0.5
  %v1610 = vmul.f32 %v1602, 0.5
  %v1611 = vmul.f32 %v1603, 0.5
  %v1612 = vmul.f32 %v1604, 0.5
  %v1613 = vmul.f32 %v1605, 0.5
  %v1614 = vtanh.pop %v1608
  %v1615 = vtanh.pop %v1609
  %v1616 = vtanh.pop %v1610
  %v1617 = vtanh.pop %v1611
  %v1618 = vtanh.pop %v1612
  %v1619 = vtanh.pop %v1613
  %v1620 = vmul.f32 %v1614, 0.5
  %v1621 = vmul.f32 %v1615, 0.5
  %v1622 = vmul.f32 %v1616, 0.5
  %v1623 = vmul.f32 %v1617, 0.5
  %v1624 = vmul.f32 %v1618, 0.5
  %v1625 = vmul.f32 %v1619, 0.5
  %v1626 = vadd.f32 %v1620, 0.5
  %v1627 = vadd.f32 %v1621, 0.5
  %v1628 = vadd.f32 %v1622, 0.5
  %v1629 = vadd.f32 %v1623, 0.5
  %v1630 = vadd.f32 %v1624, 0.5
  %v1631 = vadd.f32 %v1625, 0.5
  %v1632 = vtanh.pop %v1606
  %v1633 = vtanh.pop %v1607
  %v1634 = vmul.f32 %v1628, %v1480
  %v1635 = vmul.f32 %v1629, %v1481
  %v1636 = vmul.f32 %v1626, %v1632
  %v1637 = vmul.f32 %v1627, %v1633
  %v1638 = vadd.f32 %v1634, %v1636
  %v1639 = vadd.f32 %v1635, %v1637
  %v1640 = vtanh.pop %v1638
  %v1641 = vtanh.pop %v1639
  %v1642 = vmul.f32 %v1630, %v1640
  %v1643 = vmul.f32 %v1631, %v1641
  %s1644 = scalar_lea.vmem [#allocation2], 48
  %v1645 = vld [vmem:[%s1644] sm:$0xff]
  %v1646 = vld [vmem:[%s1644 + $0x40] sm:$0xff]
  %v1647 = vld [vmem:[%s1644 + $0x80] sm:$0xff]
  %v1648 = vld [vmem:[%s1644 + $0xc0] sm:$0xff]
  %v1649 = vld [vmem:[%s1644 + $0x100] sm:$0xff]
  %v1650 = vld [vmem:[%s1644 + $0x140] sm:$0xff]
  %v1651 = vld [vmem:[%s1644 + $0x180] sm:$0xff]
  %v1652 = vld [vmem:[%s1644 + $0x1c0] sm:$0xff]
  %1653 = vmatprep.subr.mxu0 0.0
  %1654 = vmatpush1.msra.mxu0 %v1642
  %1655 = vmatprep.subr.mxu0 0.0
  %1656 = vmatpush1.msra.mxu0 %v1643
  %1657 = vmatprep.subr.mxu0 0.0
  %1658 = vmatpush1.msra.mxu0 0.0
  %1659 = vmatprep.subr.mxu0 0.0
  %1660 = vmatpush1.msra.mxu0 0.0
  %1661 = vmatprep.subr.mxu0 0.0
  %1662 = vmatpush1.msra.mxu0 0.0
  %1663 = vmatprep.subr.mxu0 0.0
  %1664 = vmatpush1.msra.mxu0 0.0
  %1665 = vmatprep.subr.mxu0 0.0
  %1666 = vmatpush1.msra.mxu0 0.0
  %1667 = vmatprep.subr.mxu0 0.0
  %1668 = vmatpush1.msra.mxu0 0.0
  %1669 = vmatprep.subr.mxu0 0.0
  %1670 = vmatpush1.msra.mxu0 0.0
  %1671 = vmatprep.subr.mxu0 0.0
  %1672 = vmatpush1.msra.mxu0 0.0
  %1673 = vmatprep.subr.mxu0 0.0
  %1674 = vmatpush1.msra.mxu0 0.0
  %1675 = vmatprep.subr.mxu0 0.0
  %1676 = vmatpush1.msra.mxu0 0.0
  %1677 = vmatprep.subr.mxu0 0.0
  %1678 = vmatpush1.msra.mxu0 0.0
  %1679 = vmatprep.subr.mxu0 0.0
  %1680 = vmatpush1.msra.mxu0 0.0
  %1681 = vmatprep.subr.mxu0 0.0
  %1682 = vmatpush1.msra.mxu0 0.0
  %1683 = vmatprep.subr.mxu0 0.0
  %1684 = vmatpush1.msra.mxu0 0.0
  %1685 = vmatprep.subr.mxu0 0.0
  %1686 = vmatpush1.msra.mxu0 0.0
  %1687 = vmatprep.subr.mxu0 0.0
  %1688 = vmatpush1.msra.mxu0 0.0
  %1689 = vmatprep.subr.mxu0 0.0
  %1690 = vmatpush1.msra.mxu0 0.0
  %1691 = vmatprep.subr.mxu0 0.0
  %1692 = vmatpush1.msra.mxu0 0.0
  %1693 = vmatprep.subr.mxu0 0.0
  %1694 = vmatpush1.msra.mxu0 0.0
  %1695 = vmatprep.subr.mxu0 0.0
  %1696 = vmatpush1.msra.mxu0 0.0
  %1697 = vmatprep.subr.mxu0 0.0
  %1698 = vmatpush1.msra.mxu0 0.0
  %1699 = vmatprep.subr.mxu0 0.0
  %1700 = vmatpush1.msra.mxu0 0.0
  %1701 = vmatprep.subr.mxu0 0.0
  %1702 = vmatpush1.msra.mxu0 0.0
  %1703 = vmatprep.subr.mxu0 0.0
  %1704 = vmatpush1.msra.mxu0 0.0
  %1705 = vmatprep.subr.mxu0 0.0
  %1706 = vmatpush1.msra.mxu0 0.0
  %1707 = vmatprep.subr.mxu0 0.0
  %1708 = vmatpush1.msra.mxu0 0.0
  %1709 = vmatprep.subr.mxu0 0.0
  %1710 = vmatpush1.msra.mxu0 0.0
  %1711 = vmatprep.subr.mxu0 0.0
  %1712 = vmatpush1.msra.mxu0 0.0
  %1713 = vmatprep.subr.mxu0 0.0
  %1714 = vmatpush1.msra.mxu0 0.0
  %1715 = vmatprep.subr.mxu0 0.0
  %1716 = vmatpush1.msra.mxu0 0.0
  %1717 = vmatprep.mubr.f32.mxu0 0.0
  %1718 = vmatmul.mubr.f32.gmra.mrb[0].mxu0 %v682
  %v1719 = vpop.f32.mrb[0].mxu0
  %v1720 = vadd.f32 0.0, %v1719
  %v1721 = vpop.f32.mrb[0].mxu0
  %1722 = vmatprep.mubr.f32.mxu0 0.0
  %1723 = vmatmul.mubr.f32.gmra.mrb[0].mxu0 %v685
  %v1724 = vpop.f32.mrb[0].mxu0
  %v1725 = vadd.f32 0.0, %v1724
  %v1726 = vpop.f32.mrb[0].mxu0
  %1727 = vmatprep.mubr.f32.mxu0 0.0
  %1728 = vmatmul.mubr.f32.gmra.mrb[0].mxu0 %v688
  %v1729 = vpop.f32.mrb[0].mxu0
  %v1730 = vadd.f32 0.0, %v1729
  %v1731 = vpop.f32.mrb[0].mxu0
  %1732 = vmatprep.mubr.f32.mxu0 0.0
  %1733 = vmatmul.mubr.f32.gmra.mrb[0].mxu0 %v691
  %v1734 = vpop.f32.mrb[0].mxu0
  %v1735 = vadd.f32 0.0, %v1734
  %v1736 = vpop.f32.mrb[0].mxu0
  %1737 = vmatprep.mubr.f32.mxu0 0.0
  %1738 = vmatmul.mubr.f32.gmra.mrb[0].mxu0 %v694
  %v1739 = vpop.f32.mrb[0].mxu0
  %v1740 = vadd.f32 0.0, %v1739
  %v1741 = vpop.f32.mrb[0].mxu0
  %1742 = vmatprep.mubr.f32.mxu0 0.0
  %1743 = vmatmul.mubr.f32.gmra.mrb[0].mxu0 %v697
  %v1744 = vpop.f32.mrb[0].mxu0
  %v1745 = vadd.f32 0.0, %v1744
  %v1746 = vpop.f32.mrb[0].mxu0
  %1747 = vmatprep.mubr.f32.mxu0 0.0
  %1748 = vmatmul.mubr.f32.gmra.mrb[0].mxu0 %v700
  %v1749 = vpop.f32.mrb[0].mxu0
  %v1750 = vadd.f32 0.0, %v1749
  %v1751 = vpop.f32.mrb[0].mxu0
  %1752 = vmatprep.mubr.f32.mxu0 0.0
  %1753 = vmatmul.mubr.f32.gmra.mrb[0].mxu0 %v703
  %v1754 = vpop.f32.mrb[0].mxu0
  %v1755 = vadd.f32 0.0, %v1754
  %v1756 = vpop.f32.mrb[0].mxu0
  %1757 = vdwg.mxu0
  %v1758 = vadd.f32 %v1645, %v1720
  %v1759 = vadd.f32 %v1646, %v1725
  %v1760 = vadd.f32 %v1647, %v1730
  %v1761 = vadd.f32 %v1648, %v1735
  %v1762 = vadd.f32 %v1649, %v1740
  %v1763 = vadd.f32 %v1650, %v1745
  %v1764 = vadd.f32 %v1651, %v1750
  %v1765 = vadd.f32 %v1652, %v1755
  %v1766 = vmul.f32 %v1758, 0.5
  %v1767 = vmul.f32 %v1759, 0.5
  %v1768 = vmul.f32 %v1760, 0.5
  %v1769 = vmul.f32 %v1761, 0.5
  %v1770 = vmul.f32 %v1762, 0.5
  %v1771 = vmul.f32 %v1763, 0.5
  %v1772 = vtanh.pop %v1766
  %v1773 = vtanh.pop %v1767
  %v1774 = vtanh.pop %v1768
  %v1775 = vtanh.pop %v1769
  %v1776 = vtanh.pop %v1770
  %v1777 = vtanh.pop %v1771
  %v1778 = vmul.f32 %v1772, 0.5
  %v1779 = vmul.f32 %v1773, 0.5
  %v1780 = vmul.f32 %v1774, 0.5
  %v1781 = vmul.f32 %v1775, 0.5
  %v1782 = vmul.f32 %v1776, 0.5
  %v1783 = vmul.f32 %v1777, 0.5
  %v1784 = vadd.f32 %v1778, 0.5
  %v1785 = vadd.f32 %v1779, 0.5
  %v1786 = vadd.f32 %v1780, 0.5
  %v1787 = vadd.f32 %v1781, 0.5
  %v1788 = vadd.f32 %v1782, 0.5
  %v1789 = vadd.f32 %v1783, 0.5
  %v1790 = vtanh.pop %v1764
  %v1791 = vtanh.pop %v1765
  %v1792 = vmul.f32 %v1786, %v1638
  %v1793 = vmul.f32 %v1787, %v1639
  %v1794 = vmul.f32 %v1784, %v1790
  %v1795 = vmul.f32 %v1785, %v1791
  %v1796 = vadd.f32 %v1792, %v1794
  %v1797 = vadd.f32 %v1793, %v1795
  %v1798 = vtanh.pop %v1796
  %v1799 = vtanh.pop %v1797
  %v1800 = vmul.f32 %v1788, %v1798
  %v1801 = vmul.f32 %v1789, %v1799
  %s1802 = scalar_lea.vmem [#allocation2], 56
  %v1803 = vld [vmem:[%s1802] sm:$0xff]
  %v1804 = vld [vmem:[%s1802 + $0x40] sm:$0xff]
  %v1805 = vld [vmem:[%s1802 + $0x80] sm:$0xff]
  %v1806 = vld [vmem:[%s1802 + $0xc0] sm:$0xff]
  %v1807 = vld [vmem:[%s1802 + $0x100] sm:$0xff]
  %v1808 = vld [vmem:[%s1802 + $0x140] sm:$0xff]
  %v1809 = vld [vmem:[%s1802 + $0x180] sm:$0xff]
  %v1810 = vld [vmem:[%s1802 + $0x1c0] sm:$0xff]
  %1811 = vmatprep.subr.mxu0 0.0
  %1812 = vmatpush1.msra.mxu0 %v1800
  %1813 = vmatprep.subr.mxu0 0.0
  %1814 = vmatpush1.msra.mxu0 %v1801
  %1815 = vmatprep.subr.mxu0 0.0
  %1816 = vmatpush1.msra.mxu0 0.0
  %1817 = vmatprep.subr.mxu0 0.0
  %1818 = vmatpush1.msra.mxu0 0.0
  %1819 = vmatprep.subr.mxu0 0.0
  %1820 = vmatpush1.msra.mxu0 0.0
  %1821 = vmatprep.subr.mxu0 0.0
  %1822 = vmatpush1.msra.mxu0 0.0
  %1823 = vmatprep.subr.mxu0 0.0
  %1824 = vmatpush1.msra.mxu0 0.0
  %1825 = vmatprep.subr.mxu0 0.0
  %1826 = vmatpush1.msra.mxu0 0.0
  %1827 = vmatprep.subr.mxu0 0.0
  %1828 = vmatpush1.msra.mxu0 0.0
  %1829 = vmatprep.subr.mxu0 0.0
  %1830 = vmatpush1.msra.mxu0 0.0
  %1831 = vmatprep.subr.mxu0 0.0
  %1832 = vmatpush1.msra.mxu0 0.0
  %1833 = vmatprep.subr.mxu0 0.0
  %1834 = vmatpush1.msra.mxu0 0.0
  %1835 = vmatprep.subr.mxu0 0.0
  %1836 = vmatpush1.msra.mxu0 0.0
  %1837 = vmatprep.subr.mxu0 0.0
  %1838 = vmatpush1.msra.mxu0 0.0
  %1839 = vmatprep.subr.mxu0 0.0
  %1840 = vmatpush1.msra.mxu0 0.0
  %1841 = vmatprep.subr.mxu0 0.0
  %1842 = vmatpush1.msra.mxu0 0.0
  %1843 = vmatprep.subr.mxu0 0.0
  %1844 = vmatpush1.msra.mxu0 0.0
  %1845 = vmatprep.subr.mxu0 0.0
  %1846 = vmatpush1.msra.mxu0 0.0
  %1847 = vmatprep.subr.mxu0 0.0
  %1848 = vmatpush1.msra.mxu0 0.0
  %1849 = vmatprep.subr.mxu0 0.0
  %1850 = vmatpush1.msra.mxu0 0.0
  %1851 = vmatprep.subr.mxu0 0.0
  %1852 = vmatpush1.msra.mxu0 0.0
  %1853 = vmatprep.subr.mxu0 0.0
  %1854 = vmatpush1.msra.mxu0 0.0
  %1855 = vmatprep.subr.mxu0 0.0
  %1856 = vmatpush1.msra.mxu0 0.0
  %1857 = vmatprep.subr.mxu0 0.0
  %1858 = vmatpush1.msra.mxu0 0.0
  %1859 = vmatprep.subr.mxu0 0.0
  %1860 = vmatpush1.msra.mxu0 0.0
  %1861 = vmatprep.subr.mxu0 0.0
  %1862 = vmatpush1.msra.mxu0 0.0
  %1863 = vmatprep.subr.mxu0 0.0
  %1864 = vmatpush1.msra.mxu0 0.0
  %1865 = vmatprep.subr.mxu0 0.0
  %1866 = vmatpush1.msra.mxu0 0.0
  %1867 = vmatprep.subr.mxu0 0.0
  %1868 = vmatpush1.msra.mxu0 0.0
  %1869 = vmatprep.subr.mxu0 0.0
  %1870 = vmatpush1.msra.mxu0 0.0
  %1871 = vmatprep.subr.mxu0 0.0
  %1872 = vmatpush1.msra.mxu0 0.0
  %1873 = vmatprep.subr.mxu0 0.0
  %1874 = vmatpush1.msra.mxu0 0.0
  %1875 = vmatprep.mubr.f32.mxu0 0.0
  %1876 = vmatmul.mubr.f32.gmra.mrb[0].mxu0 %v682
  %v1877 = vpop.f32.mrb[0].mxu0
  %v1878 = vadd.f32 0.0, %v1877
  %v1879 = vpop.f32.mrb[0].mxu0
  %1880 = vmatprep.mubr.f32.mxu0 0.0
  %1881 = vmatmul.mubr.f32.gmra.mrb[0].mxu0 %v685
  %v1882 = vpop.f32.mrb[0].mxu0
  %v1883 = vadd.f32 0.0, %v1882
  %v1884 = vpop.f32.mrb[0].mxu0
  %1885 = vmatprep.mubr.f32.mxu0 0.0
  %1886 = vmatmul.mubr.f32.gmra.mrb[0].mxu0 %v688
  %v1887 = vpop.f32.mrb[0].mxu0
  %v1888 = vadd.f32 0.0, %v1887
  %v1889 = vpop.f32.mrb[0].mxu0
  %1890 = vmatprep.mubr.f32.mxu0 0.0
  %1891 = vmatmul.mubr.f32.gmra.mrb[0].mxu0 %v691
  %v1892 = vpop.f32.mrb[0].mxu0
  %v1893 = vadd.f32 0.0, %v1892
  %v1894 = vpop.f32.mrb[0].mxu0
  %1895 = vmatprep.mubr.f32.mxu0 0.0
  %1896 = vmatmul.mubr.f32.gmra.mrb[0].mxu0 %v694
  %v1897 = vpop.f32.mrb[0].mxu0
  %v1898 = vadd.f32 0.0, %v1897
  %v1899 = vpop.f32.mrb[0].mxu0
  %1900 = vmatprep.mubr.f32.mxu0 0.0
  %1901 = vmatmul.mubr.f32.gmra.mrb[0].mxu0 %v697
  %v1902 = vpop.f32.mrb[0].mxu0
  %v1903 = vadd.f32 0.0, %v1902
  %v1904 = vpop.f32.mrb[0].mxu0
  %1905 = vmatprep.mubr.f32.mxu0 0.0
  %1906 = vmatmul.mubr.f32.gmra.mrb[0].mxu0 %v700
  %v1907 = vpop.f32.mrb[0].mxu0
  %v1908 = vadd.f32 0.0, %v1907
  %v1909 = vpop.f32.mrb[0].mxu0
  %1910 = vmatprep.mubr.f32.mxu0 0.0
  %1911 = vmatmul.mubr.f32.gmra.mrb[0].mxu0 %v703
  %v1912 = vpop.f32.mrb[0].mxu0
  %v1913 = vadd.f32 0.0, %v1912
  %v1914 = vpop.f32.mrb[0].mxu0
  %1915 = vdwg.mxu0
  %v1916 = vadd.f32 %v1803, %v1878
  %v1917 = vadd.f32 %v1804, %v1883
  %v1918 = vadd.f32 %v1805, %v1888
  %v1919 = vadd.f32 %v1806, %v1893
  %v1920 = vadd.f32 %v1807, %v1898
  %v1921 = vadd.f32 %v1808, %v1903
  %v1922 = vadd.f32 %v1809, %v1908
  %v1923 = vadd.f32 %v1810, %v1913
  %v1924 = vmul.f32 %v1916, 0.5
  %v1925 = vmul.f32 %v1917, 0.5
  %v1926 = vmul.f32 %v1918, 0.5
  %v1927 = vmul.f32 %v1919, 0.5
  %v1928 = vmul.f32 %v1920, 0.5
  %v1929 = vmul.f32 %v1921, 0.5
  %v1930 = vtanh.pop %v1924
  %v1931 = vtanh.pop %v1925
  %v1932 = vtanh.pop %v1926
  %v1933 = vtanh.pop %v1927
  %v1934 = vtanh.pop %v1928
  %v1935 = vtanh.pop %v1929
  %v1936 = vmul.f32 %v1930, 0.5
  %v1937 = vmul.f32 %v1931, 0.5
  %v1938 = vmul.f32 %v1932, 0.5
  %v1939 = vmul.f32 %v1933, 0.5
  %v1940 = vmul.f32 %v1934, 0.5
  %v1941 = vmul.f32 %v1935, 0.5
  %v1942 = vadd.f32 %v1936, 0.5
  %v1943 = vadd.f32 %v1937, 0.5
  %v1944 = vadd.f32 %v1938, 0.5
  %v1945 = vadd.f32 %v1939, 0.5
  %v1946 = vadd.f32 %v1940, 0.5
  %v1947 = vadd.f32 %v1941, 0.5
  %v1948 = vtanh.pop %v1922
  %v1949 = vtanh.pop %v1923
  %v1950 = vmul.f32 %v1944, %v1796
  %v1951 = vmul.f32 %v1945, %v1797
  %v1952 = vmul.f32 %v1942, %v1948
  %v1953 = vmul.f32 %v1943, %v1949
  %v1954 = vadd.f32 %v1950, %v1952
  %v1955 = vadd.f32 %v1951, %v1953
  %v1956 = vtanh.pop %v1954
  %v1957 = vtanh.pop %v1955
  %v1958 = vmul.f32 %v1946, %v1956
  %v1959 = vmul.f32 %v1947, %v1957
  %v1960 = vld [vmem:[%s51] sm:$0xff]
  %v1961 = vld [vmem:[%s57] sm:$0xff]
  %1963 = vset.pattern.permute.xlu0 0
  %1964 = vperm.xlu0 %1963, %v1961
  %v1965 = vpop.permute.xlu0 %1964
  %v1968 = vsel %vm680, %v1960, 0
  %1970 = vmatprep.subr.mxu0 0.0
  %1971 = vmatpush1.msra.mxu0 %v1958
  %1972 = vmatprep.subr.mxu0 0.0
  %1973 = vmatpush1.msra.mxu0 %v1959
  %1974 = vmatprep.subr.mxu0 0.0
  %1975 = vmatpush1.msra.mxu0 0.0
  %1976 = vmatprep.subr.mxu0 0.0
  %1977 = vmatpush1.msra.mxu0 0.0
  %1978 = vmatprep.subr.mxu0 0.0
  %1979 = vmatpush1.msra.mxu0 0.0
  %1980 = vmatprep.subr.mxu0 0.0
  %1981 = vmatpush1.msra.mxu0 0.0
  %1982 = vmatprep.subr.mxu0 0.0
  %1983 = vmatpush1.msra.mxu0 0.0
  %1984 = vmatprep.subr.mxu0 0.0
  %1985 = vmatpush1.msra.mxu0 0.0
  %1986 = vmatprep.subr.mxu0 0.0
  %1987 = vmatpush1.msra.mxu0 0.0
  %1988 = vmatprep.subr.mxu0 0.0
  %1989 = vmatpush1.msra.mxu0 0.0
  %1990 = vmatprep.subr.mxu0 0.0
  %1991 = vmatpush1.msra.mxu0 0.0
  %1992 = vmatprep.subr.mxu0 0.0
  %1993 = vmatpush1.msra.mxu0 0.0
  %1994 = vmatprep.subr.mxu0 0.0
  %1995 = vmatpush1.msra.mxu0 0.0
  %1996 = vmatprep.subr.mxu0 0.0
  %1997 = vmatpush1.msra.mxu0 0.0
  %1998 = vmatprep.subr.mxu0 0.0
  %1999 = vmatpush1.msra.mxu0 0.0
  %2000 = vmatprep.subr.mxu0 0.0
  %2001 = vmatpush1.msra.mxu0 0.0
  %2002 = vmatprep.subr.mxu0 0.0
  %2003 = vmatpush1.msra.mxu0 0.0
  %2004 = vmatprep.subr.mxu0 0.0
  %2005 = vmatpush1.msra.mxu0 0.0
  %2006 = vmatprep.subr.mxu0 0.0
  %2007 = vmatpush1.msra.mxu0 0.0
  %2008 = vmatprep.subr.mxu0 0.0
  %2009 = vmatpush1.msra.mxu0 0.0
  %2010 = vmatprep.subr.mxu0 0.0
  %2011 = vmatpush1.msra.mxu0 0.0
  %2012 = vmatprep.subr.mxu0 0.0
  %2013 = vmatpush1.msra.mxu0 0.0
  %2014 = vmatprep.subr.mxu0 0.0
  %2015 = vmatpush1.msra.mxu0 0.0
  %2016 = vmatprep.subr.mxu0 0.0
  %2017 = vmatpush1.msra.mxu0 0.0
  %2018 = vmatprep.subr.mxu0 0.0
  %2019 = vmatpush1.msra.mxu0 0.0
  %2020 = vmatprep.subr.mxu0 0.0
  %2021 = vmatpush1.msra.mxu0 0.0
  %2022 = vmatprep.subr.mxu0 0.0
  %2023 = vmatpush1.msra.mxu0 0.0
  %2024 = vmatprep.subr.mxu0 0.0
  %2025 = vmatpush1.msra.mxu0 0.0
  %2026 = vmatprep.subr.mxu0 0.0
  %2027 = vmatpush1.msra.mxu0 0.0
  %2028 = vmatprep.subr.mxu0 0.0
  %2029 = vmatpush1.msra.mxu0 0.0
  %2030 = vmatprep.subr.mxu0 0.0
  %2031 = vmatpush1.msra.mxu0 0.0
  %2032 = vmatprep.subr.mxu0 0.0
  %2033 = vmatpush1.msra.mxu0 0.0
  %2034 = vmatprep.mubr.f32.mxu0 0.0
  %2035 = vmatmul.mubr.f32.gmra.mrb[0].mxu0 %v1968
  %v2036 = vpop.f32.mrb[0].mxu0
  %v2037 = vadd.f32 %v1965, %v2036
  %v2038 = vpop.f32.mrb[0].mxu0
  %2039 = vdwg.mxu0
  %2040 = vst [vmem:[%s7] sm:$0xff] %v2037
  // Predicated region
  $region26: #{_forward_pallas.1} parent=0 // pred_check
    _
  $region27: #{_forward_pallas.1} parent=0 // pred_check_branch
    %2042 = sbr.rel (0) target = $region29
  $region28: #{_forward_pallas.1} parent=0 // pred_region
    _
  $region29: #{_forward_pallas.1} parent=0 // pred_fallthru
    _
  // Predicated region
  $region30: #{_forward_pallas.1} parent=0 // pred_check
    _
  $region31: #{_forward_pallas.1} parent=0 // pred_check_branch
    %2044 = sbr.rel (0) target = $region33
  $region32: #{_forward_pallas.1} parent=0 // pred_region
    _
  $region33: #{_forward_pallas.1} parent=0 // pred_fallthru
    _

</llo_original>
